<compile_context>
chip_gen: v7x
topology: tpu7x:2x2x1
jax: 0.10.0
libtpu: 0.0.40
codegen_flags: <defaults>
</compile_context>

<pallas_src>
import jax
import jax.numpy as jnp
from jax.experimental import pallas as pl
from jax.experimental.pallas import tpu as pltpu

EPS = 1e-6
LANE = 128


def layernorm_kernel(x_ref, gamma_ref, beta_ref, o_ref):
    # x_ref: (R, C) tile in VMEM; gamma_ref/beta_ref: (1, C)
    x = x_ref[...]
    if x.dtype != jnp.float32:
        x = x.astype(jnp.float32)

    C = x.shape[-1]
    inv_c = jnp.float32(1.0 / C)

    # ---- Pass 1: mean. VPU pre-reduce C -> 128 lanes, then one XLU sum. ----
    if C % LANE == 0 and C > LANE:
        n_chunks = C // LANE
        s1 = x[..., 0:LANE]
        for c in range(1, n_chunks):
            s1 = s1 + x[..., c * LANE:(c + 1) * LANE]
        mean = jnp.sum(s1, axis=-1, keepdims=True) * inv_c        # (R, 1)
    else:
        mean = jnp.sum(x, axis=-1, keepdims=True) * inv_c

    # ---- Pass 2: centered variance (two-pass, matches torch LayerNorm). ----
    xc = x - mean                                                 # (R, C)
    if C % LANE == 0 and C > LANE:
        n_chunks = C // LANE
        c0 = xc[..., 0:LANE]
        s2 = c0 * c0
        for c in range(1, n_chunks):
            chunk = xc[..., c * LANE:(c + 1) * LANE]
            s2 = s2 + chunk * chunk
        var = jnp.sum(s2, axis=-1, keepdims=True) * inv_c         # (R, 1)
    else:
        var = jnp.sum(xc * xc, axis=-1, keepdims=True) * inv_c

    inv = jax.lax.rsqrt(var + EPS)

    gamma = gamma_ref[...]
    beta = beta_ref[...]
    if gamma.dtype != jnp.float32:
        gamma = gamma.astype(jnp.float32)
    if beta.dtype != jnp.float32:
        beta = beta.astype(jnp.float32)

    # Single fused normalization + affine sweep; lane-dense store.
    o_ref[...] = (xc * inv * gamma + beta).astype(o_ref.dtype)


def layernorm(x, gamma, beta):
    """x: (..., C); gamma, beta: (C,). Normalizes over the last axis."""
    orig_shape = x.shape
    C = orig_shape[-1]
    rows = 1
    for d in orig_shape[:-1]:
        rows *= d

    x2 = x.reshape(rows, C)
    gamma2 = gamma.reshape(1, C)
    beta2 = beta.reshape(1, C)

    out = pl.pallas_call(
        layernorm_kernel,
        out_shape=jax.ShapeDtypeStruct((rows, C), x.dtype),
        grid_spec=pltpu.PrefetchScalarGridSpec(
            num_scalar_prefetch=0,
            grid=(1,),
            in_specs=[
                pl.BlockSpec((rows, C), lambda i: (0, 0)),
                pl.BlockSpec((1, C), lambda i: (0, 0)),
                pl.BlockSpec((1, C), lambda i: (0, 0)),
            ],
            out_specs=pl.BlockSpec((rows, C), lambda i: (0, 0)),
        ),
        compiler_params=pltpu.CompilerParams(
            dimension_semantics=("arbitrary",)
        ),
    )(x2, gamma2, beta2)
    return out.reshape(orig_shape)


if __name__ == "__main__":
    key = jax.random.PRNGKey(0)
    kx, kg, kb = jax.random.split(key, 3)

    N, H, W, C = 1, 14, 14, 768
    x = jax.random.normal(kx, (N, H, W, C), dtype=jnp.float32)

    # PyTorch default init is gamma=1, beta=0; add a tiny deterministic
    # perturbation so the affine path is actually exercised.
    gamma = jnp.ones((C,), dtype=jnp.float32) + 0.01 * jax.random.normal(kg, (C,), dtype=jnp.float32)
    beta = jnp.zeros((C,), dtype=jnp.float32) + 0.01 * jax.random.normal(kb, (C,), dtype=jnp.float32)

    y = layernorm(x, gamma, beta)
    jax.block_until_ready(y)

    # Reference check in plain JAX (two-pass formula, same as torch LayerNorm).
    mean = jnp.mean(x, axis=-1, keepdims=True)
    var = jnp.mean((x - mean) ** 2, axis=-1, keepdims=True)
    y_ref = (x - mean) * jax.lax.rsqrt(var + EPS) * gamma + beta
    assert jnp.allclose(y, y_ref, atol=1e-4, rtol=1e-4), "mismatch vs reference"

    print("KERNEL_OK")
</pallas_src>

<mosaic_0001>
module attributes {stable_mosaic.version = 11 : i64} {
  func.func @layernorm_kernel(%arg0: i32, %arg1: memref<196x768xf32, #tpu.memory_space<vmem>>, %arg2: memref<1x768xf32, #tpu.memory_space<vmem>>, %arg3: memref<1x768xf32, #tpu.memory_space<vmem>>, %arg4: memref<196x768xf32, #tpu.memory_space<vmem>>) attributes {dimension_semantics = [#tpu.dimension_semantics<arbitrary>], iteration_bounds = array<i64: 1>, scalar_prefetch = 0 : i64, scratch_operands = 0 : i64, tpu.core_type = #tpu.core_type<tc>, window_params = [{pipeline_mode = #tpu.pipeline_mode<synchronous>, transform_indices = @transform_0, window_bounds = array<i64: 196, 768>}, {pipeline_mode = #tpu.pipeline_mode<synchronous>, transform_indices = @transform_1, window_bounds = array<i64: 1, 768>}, {pipeline_mode = #tpu.pipeline_mode<synchronous>, transform_indices = @transform_2, window_bounds = array<i64: 1, 768>}, {pipeline_mode = #tpu.pipeline_mode<synchronous>, transform_indices = @transform_3, window_bounds = array<i64: 196, 768>}]} {
    %c0 = arith.constant 0 : index
    %c0_0 = arith.constant 0 : index
    %0 = vector.load %arg1[%c0, %c0_0] : memref<196x768xf32, #tpu.memory_space<vmem>>, vector<196x768xf32>
    %1 = vector.extract_strided_slice %0 {offsets = [0, 0], sizes = [196, 128], strides = [1, 1]} : vector<196x768xf32> to vector<196x128xf32>
    %2 = vector.extract_strided_slice %0 {offsets = [0, 128], sizes = [196, 128], strides = [1, 1]} : vector<196x768xf32> to vector<196x128xf32>
    %3 = arith.addf %1, %2 : vector<196x128xf32>
    %4 = vector.extract_strided_slice %0 {offsets = [0, 256], sizes = [196, 128], strides = [1, 1]} : vector<196x768xf32> to vector<196x128xf32>
    %5 = arith.addf %3, %4 : vector<196x128xf32>
    %6 = vector.extract_strided_slice %0 {offsets = [0, 384], sizes = [196, 128], strides = [1, 1]} : vector<196x768xf32> to vector<196x128xf32>
    %7 = arith.addf %5, %6 : vector<196x128xf32>
    %8 = vector.extract_strided_slice %0 {offsets = [0, 512], sizes = [196, 128], strides = [1, 1]} : vector<196x768xf32> to vector<196x128xf32>
    %9 = arith.addf %7, %8 : vector<196x128xf32>
    %10 = vector.extract_strided_slice %0 {offsets = [0, 640], sizes = [196, 128], strides = [1, 1]} : vector<196x768xf32> to vector<196x128xf32>
    %11 = arith.addf %9, %10 : vector<196x128xf32>
    %cst = arith.constant dense<0.000000e+00> : vector<196xf32>
    %12 = vector.multi_reduction <add>, %11, %cst [1] : vector<196x128xf32> to vector<196xf32>
    %13 = vector.shape_cast %12 : vector<196xf32> to vector<196x1xf32>
    %cst_1 = arith.constant 0.00130208337 : f32
    %14 = vector.broadcast %cst_1 : f32 to vector<196x1xf32>
    %15 = arith.mulf %13, %14 : vector<196x1xf32>
    %16 = vector.broadcast %15 : vector<196x1xf32> to vector<196x768xf32>
    %17 = arith.subf %0, %16 : vector<196x768xf32>
    %18 = vector.extract_strided_slice %17 {offsets = [0, 0], sizes = [196, 128], strides = [1, 1]} : vector<196x768xf32> to vector<196x128xf32>
    %19 = arith.mulf %18, %18 : vector<196x128xf32>
    %20 = vector.extract_strided_slice %17 {offsets = [0, 128], sizes = [196, 128], strides = [1, 1]} : vector<196x768xf32> to vector<196x128xf32>
    %21 = arith.mulf %20, %20 : vector<196x128xf32>
    %22 = arith.addf %19, %21 : vector<196x128xf32>
    %23 = vector.extract_strided_slice %17 {offsets = [0, 256], sizes = [196, 128], strides = [1, 1]} : vector<196x768xf32> to vector<196x128xf32>
    %24 = arith.mulf %23, %23 : vector<196x128xf32>
    %25 = arith.addf %22, %24 : vector<196x128xf32>
    %26 = vector.extract_strided_slice %17 {offsets = [0, 384], sizes = [196, 128], strides = [1, 1]} : vector<196x768xf32> to vector<196x128xf32>
    %27 = arith.mulf %26, %26 : vector<196x128xf32>
    %28 = arith.addf %25, %27 : vector<196x128xf32>
    %29 = vector.extract_strided_slice %17 {offsets = [0, 512], sizes = [196, 128], strides = [1, 1]} : vector<196x768xf32> to vector<196x128xf32>
    %30 = arith.mulf %29, %29 : vector<196x128xf32>
    %31 = arith.addf %28, %30 : vector<196x128xf32>
    %32 = vector.extract_strided_slice %17 {offsets = [0, 640], sizes = [196, 128], strides = [1, 1]} : vector<196x768xf32> to vector<196x128xf32>
    %33 = arith.mulf %32, %32 : vector<196x128xf32>
    %34 = arith.addf %31, %33 : vector<196x128xf32>
    %cst_2 = arith.constant dense<0.000000e+00> : vector<196xf32>
    %35 = vector.multi_reduction <add>, %34, %cst_2 [1] : vector<196x128xf32> to vector<196xf32>
    %36 = vector.shape_cast %35 : vector<196xf32> to vector<196x1xf32>
    %cst_3 = arith.constant 0.00130208337 : f32
    %37 = vector.broadcast %cst_3 : f32 to vector<196x1xf32>
    %38 = arith.mulf %36, %37 : vector<196x1xf32>
    %cst_4 = arith.constant 9.99999997E-7 : f32
    %39 = vector.broadcast %cst_4 : f32 to vector<196x1xf32>
    %40 = arith.addf %38, %39 : vector<196x1xf32>
    %41 = math.rsqrt %40 : vector<196x1xf32>
    %c0_5 = arith.constant 0 : index
    %c0_6 = arith.constant 0 : index
    %42 = vector.load %arg2[%c0_5, %c0_6] : memref<1x768xf32, #tpu.memory_space<vmem>>, vector<1x768xf32>
    %c0_7 = arith.constant 0 : index
    %c0_8 = arith.constant 0 : index
    %43 = vector.load %arg3[%c0_7, %c0_8] : memref<1x768xf32, #tpu.memory_space<vmem>>, vector<1x768xf32>
    %44 = vector.broadcast %41 : vector<196x1xf32> to vector<196x768xf32>
    %45 = arith.mulf %17, %44 : vector<196x768xf32>
    %46 = vector.broadcast %42 : vector<1x768xf32> to vector<196x768xf32>
    %47 = arith.mulf %45, %46 : vector<196x768xf32>
    %48 = vector.broadcast %43 : vector<1x768xf32> to vector<196x768xf32>
    %49 = arith.addf %47, %48 : vector<196x768xf32>
    %c0_9 = arith.constant 0 : index
    %c0_10 = arith.constant 0 : index
    %50 = vector.load %arg4[%c0_9, %c0_10] : memref<196x768xf32, #tpu.memory_space<vmem>>, vector<196x768xf32>
    tpu.vector_store %arg4[%c0_9, %c0_10], %49 {strides = array<i32>} : memref<196x768xf32, #tpu.memory_space<vmem>>, vector<196x768xf32>,
    return
  }
  func.func @transform_0(%arg0: i32) -> (i32, i32) {
    %c0_i32 = arith.constant 0 : i32
    %c0_i32_0 = arith.constant 0 : i32
    %c0_i32_1 = arith.constant 0 : i32
    return %c0_i32, %c0_i32_0 : i32, i32
  }
  func.func @transform_1(%arg0: i32) -> (i32, i32) {
    %c0_i32 = arith.constant 0 : i32
    %c0_i32_0 = arith.constant 0 : i32
    %c0_i32_1 = arith.constant 0 : i32
    return %c0_i32, %c0_i32_0 : i32, i32
  }
  func.func @transform_2(%arg0: i32) -> (i32, i32) {
    %c0_i32 = arith.constant 0 : i32
    %c0_i32_0 = arith.constant 0 : i32
    %c0_i32_1 = arith.constant 0 : i32
    return %c0_i32, %c0_i32_0 : i32, i32
  }
  func.func @transform_3(%arg0: i32) -> (i32, i32) {
    %c0_i32 = arith.constant 0 : i32
    %c0_i32_0 = arith.constant 0 : i32
    %c0_i32_1 = arith.constant 0 : i32
    return %c0_i32, %c0_i32_0 : i32, i32
  }
}

</mosaic_0001>

<llo_original>
// kernel: tpu_custom_call.1
$region0: #{tpu_custom_call.1}
  #allocation0 [shape = 'u32[]', space=smem, size = 0x4, offset = 0x4, fixed_abs, tag = 'smem constant byte address 0x4 - core index']
  #allocation1 [shape = 'u32[144,128]{1,0:T(1,128)}', space=vmem, size = 0x12000, scoped, tag = 'internal scratch']
  %s0 = inlined_call_operand.hbm [shape: f32[196,768], index: 0, kind: input, shape index: {}]
  %s1 = inlined_call_operand.hbm [shape: f32[1,768], index: 1, kind: input, shape index: {}]
  %s2 = inlined_call_operand.vmem [shape: f32[1,768], index: 2, kind: input, shape index: {}]
  %s3 = inlined_call_operand.hbm [shape: f32[196,768], index: 3, kind: output, shape index: {}]
  %s4 = sld [smem:[#allocation0]]
  $region30: #{tpu_custom_call.1} parent=0
    _
  %s6 = ssub.s32 1, %s4
  %s7 = scalar_select 0, %s6, %s4
  $region1: #{tpu_custom_call.1} parent=0
    #allocation2 [shape = 'u8[614400]{0}', space=vmem, size = 0x96000, scoped, tag = 'input window, operand 0, single buffered']
    #allocation3 [shape = 's32[1]{0}', space=sflag, size = 0x4, scoped, tag = 'scoped memory for tpu_custom_call.1']
    #allocation4 [shape = 's32[1]{0}', space=sflag, size = 0x4, scoped, tag = 'scoped memory for tpu_custom_call.1']
    #allocation5 [shape = 'u8[3072]{0}', space=vmem, size = 0xc00, scoped, tag = 'input window, operand 1, single buffered']
    #allocation6 [shape = 's32[1]{0}', space=sflag, size = 0x4, scoped, tag = 'scoped memory for tpu_custom_call.1']
    #allocation7 [shape = 'u8[614400]{0}', space=vmem, size = 0x96000, scoped, tag = 'output window, operand 0, single buffered']
    %8 = vsyncpa [#allocation3], 0
    %9 = vsyncpa [#allocation6], 0
    %10 = vsyncpa [#allocation4], 0
    // Predicated region
    $region2: #{tpu_custom_call.1} parent=1 // pred_check
      _
    $region3: #{tpu_custom_call.1} parent=1 // pred_check_branch
      %12 = sbr.rel (0) target = $region5
    $region4: #{tpu_custom_call.1} parent=1 // pred_region
      %s14 = ssub.s32 19200, 19200
      %15 = vsyncadd [#allocation3], %s14
      %s16 = sshll.u32 [#allocation2], 4
      %s17 = int_to_ptr.vmem [resolvable:$true] %s16
      %22 = dma.hbm_to_vmem [thread:$0]  %s0, 19200, %s17, [#allocation3], 768, 768, 48
    $region5: #{tpu_custom_call.1} parent=1 // pred_fallthru
      _
    // Predicated region
    $region6: #{tpu_custom_call.1} parent=1 // pred_check
      _
    $region7: #{tpu_custom_call.1} parent=1 // pred_check_branch
      %24 = sbr.rel (0) target = $region9
    $region8: #{tpu_custom_call.1} parent=1 // pred_region
      %s26 = ssub.s32 96, 96
      %27 = vsyncadd [#allocation6], %s26
      %s29 = sshll.u32 [#allocation5], 4
      %s30 = int_to_ptr.vmem [resolvable:$true] %s29
      %32 = dma.hbm_to_vmem [thread:$0]  %s1, 96, %s30, [#allocation6]
    $region9: #{tpu_custom_call.1} parent=1 // pred_fallthru
      _
    // Predicated region
    $region10: #{tpu_custom_call.1} parent=1 // pred_check
      _
    $region11: #{tpu_custom_call.1} parent=1 // pred_check_branch
      %34 = sbr.rel (0) target = $region13
    $region12: #{tpu_custom_call.1} parent=1 // pred_region
      _
    $region13: #{tpu_custom_call.1} parent=1 // pred_fallthru
      _
    // Predicated region
    $region14: #{tpu_custom_call.1} parent=1 // pred_check
      _
    $region15: #{tpu_custom_call.1} parent=1 // pred_check_branch
      %36 = sbr.rel (0) target = $region17
    $region16: #{tpu_custom_call.1} parent=1 // pred_region
      %37 = dma.done [#allocation3], 19200
    $region17: #{tpu_custom_call.1} parent=1 // pred_fallthru
      _
    // Predicated region
    $region18: #{tpu_custom_call.1} parent=1 // pred_check
      _
    $region19: #{tpu_custom_call.1} parent=1 // pred_check_branch
      %39 = sbr.rel (0) target = $region21
    $region20: #{tpu_custom_call.1} parent=1 // pred_region
      %40 = dma.done [#allocation6], 96
    $region21: #{tpu_custom_call.1} parent=1 // pred_fallthru
      _
    %v41 = vld [vmem:[#allocation2] sm:$0xff]
    %v42 = vld [vmem:[#allocation2 + $0x8] sm:$0xff]
    %v43 = vld [vmem:[#allocation2 + $0x10] sm:$0xff]
    %v44 = vld [vmem:[#allocation2 + $0x18] sm:$0xff]
    %v45 = vld [vmem:[#allocation2 + $0x20] sm:$0xff]
    %v46 = vld [vmem:[#allocation2 + $0x28] sm:$0xff]
    %v47 = vld [vmem:[#allocation2 + $0x30] sm:$0xff]
    %v48 = vld [vmem:[#allocation2 + $0x38] sm:$0xff]
    %v49 = vld [vmem:[#allocation2 + $0x40] sm:$0xff]
    %v50 = vld [vmem:[#allocation2 + $0x48] sm:$0xff]
    %v51 = vld [vmem:[#allocation2 + $0x50] sm:$0xff]
    %v52 = vld [vmem:[#allocation2 + $0x58] sm:$0xff]
    %v53 = vld [vmem:[#allocation2 + $0x60] sm:$0xff]
    %v54 = vld [vmem:[#allocation2 + $0x68] sm:$0xff]
    %v55 = vld [vmem:[#allocation2 + $0x70] sm:$0xff]
    %v56 = vld [vmem:[#allocation2 + $0x78] sm:$0xff]
    %v57 = vld [vmem:[#allocation2 + $0x80] sm:$0xff]
    %v58 = vld [vmem:[#allocation2 + $0x88] sm:$0xff]
    %v59 = vld [vmem:[#allocation2 + $0x90] sm:$0xff]
    %v60 = vld [vmem:[#allocation2 + $0x98] sm:$0xff]
    %v61 = vld [vmem:[#allocation2 + $0xa0] sm:$0xff]
    %v62 = vld [vmem:[#allocation2 + $0xa8] sm:$0xff]
    %v63 = vld [vmem:[#allocation2 + $0xb0] sm:$0xff]
    %v64 = vld [vmem:[#allocation2 + $0xb8] sm:$0xff]
    %v65 = vld [vmem:[#allocation2 + $0xc0] sm:$0xff]
    %v66 = vld [vmem:[#allocation2 + $0xc8] sm:$0xff]
    %v67 = vld [vmem:[#allocation2 + $0xd0] sm:$0xff]
    %v68 = vld [vmem:[#allocation2 + $0xd8] sm:$0xff]
    %v69 = vld [vmem:[#allocation2 + $0xe0] sm:$0xff]
    %v70 = vld [vmem:[#allocation2 + $0xe8] sm:$0xff]
    %v71 = vld [vmem:[#allocation2 + $0xf0] sm:$0xff]
    %v72 = vld [vmem:[#allocation2 + $0xf8] sm:$0xff]
    %v73 = vld [vmem:[#allocation2 + $0x100] sm:$0xff]
    %v74 = vld [vmem:[#allocation2 + $0x108] sm:$0xff]
    %v75 = vld [vmem:[#allocation2 + $0x110] sm:$0xff]
    %v76 = vld [vmem:[#allocation2 + $0x118] sm:$0xff]
    %v77 = vld [vmem:[#allocation2 + $0x120] sm:$0xff]
    %v78 = vld [vmem:[#allocation2 + $0x128] sm:$0xff]
    %v79 = vld [vmem:[#allocation2 + $0x130] sm:$0xff]
    %v80 = vld [vmem:[#allocation2 + $0x138] sm:$0xff]
    %v81 = vld [vmem:[#allocation2 + $0x140] sm:$0xff]
    %v82 = vld [vmem:[#allocation2 + $0x148] sm:$0xff]
    %v83 = vld [vmem:[#allocation2 + $0x150] sm:$0xff]
    %v84 = vld [vmem:[#allocation2 + $0x158] sm:$0xff]
    %v85 = vld [vmem:[#allocation2 + $0x160] sm:$0xff]
    %v86 = vld [vmem:[#allocation2 + $0x168] sm:$0xff]
    %v87 = vld [vmem:[#allocation2 + $0x170] sm:$0xff]
    %v88 = vld [vmem:[#allocation2 + $0x178] sm:$0xff]
    %v89 = vld [vmem:[#allocation2 + $0x180] sm:$0xff]
    %v90 = vld [vmem:[#allocation2 + $0x188] sm:$0xff]
    %v91 = vld [vmem:[#allocation2 + $0x190] sm:$0xff]
    %v92 = vld [vmem:[#allocation2 + $0x198] sm:$0xff]
    %v93 = vld [vmem:[#allocation2 + $0x1a0] sm:$0xff]
    %v94 = vld [vmem:[#allocation2 + $0x1a8] sm:$0xff]
    %v95 = vld [vmem:[#allocation2 + $0x1b0] sm:$0xff]
    %v96 = vld [vmem:[#allocation2 + $0x1b8] sm:$0xff]
    %v97 = vld [vmem:[#allocation2 + $0x1c0] sm:$0xff]
    %v98 = vld [vmem:[#allocation2 + $0x1c8] sm:$0xff]
    %v99 = vld [vmem:[#allocation2 + $0x1d0] sm:$0xff]
    %v100 = vld [vmem:[#allocation2 + $0x1d8] sm:$0xff]
    %v101 = vld [vmem:[#allocation2 + $0x1e0] sm:$0xff]
    %v102 = vld [vmem:[#allocation2 + $0x1e8] sm:$0xff]
    %v103 = vld [vmem:[#allocation2 + $0x1f0] sm:$0xff]
    %v104 = vld [vmem:[#allocation2 + $0x1f8] sm:$0xff]
    %v105 = vld [vmem:[#allocation2 + $0x200] sm:$0xff]
    %v106 = vld [vmem:[#allocation2 + $0x208] sm:$0xff]
    %v107 = vld [vmem:[#allocation2 + $0x210] sm:$0xff]
    %v108 = vld [vmem:[#allocation2 + $0x218] sm:$0xff]
    %v109 = vld [vmem:[#allocation2 + $0x220] sm:$0xff]
    %v110 = vld [vmem:[#allocation2 + $0x228] sm:$0xff]
    %v111 = vld [vmem:[#allocation2 + $0x230] sm:$0xff]
    %v112 = vld [vmem:[#allocation2 + $0x238] sm:$0xff]
    %v113 = vld [vmem:[#allocation2 + $0x240] sm:$0xff]
    %v114 = vld [vmem:[#allocation2 + $0x248] sm:$0xff]
    %v115 = vld [vmem:[#allocation2 + $0x250] sm:$0xff]
    %v116 = vld [vmem:[#allocation2 + $0x258] sm:$0xff]
    %v117 = vld [vmem:[#allocation2 + $0x260] sm:$0xff]
    %v118 = vld [vmem:[#allocation2 + $0x268] sm:$0xff]
    %v119 = vld [vmem:[#allocation2 + $0x270] sm:$0xff]
    %v120 = vld [vmem:[#allocation2 + $0x278] sm:$0xff]
    %v121 = vld [vmem:[#allocation2 + $0x280] sm:$0xff]
    %v122 = vld [vmem:[#allocation2 + $0x288] sm:$0xff]
    %v123 = vld [vmem:[#allocation2 + $0x290] sm:$0xff]
    %v124 = vld [vmem:[#allocation2 + $0x298] sm:$0xff]
    %v125 = vld [vmem:[#allocation2 + $0x2a0] sm:$0xff]
    %v126 = vld [vmem:[#allocation2 + $0x2a8] sm:$0xff]
    %v127 = vld [vmem:[#allocation2 + $0x2b0] sm:$0xff]
    %v128 = vld [vmem:[#allocation2 + $0x2b8] sm:$0xff]
    %v129 = vld [vmem:[#allocation2 + $0x2c0] sm:$0xff]
    %v130 = vld [vmem:[#allocation2 + $0x2c8] sm:$0xff]
    %v131 = vld [vmem:[#allocation2 + $0x2d0] sm:$0xff]
    %v132 = vld [vmem:[#allocation2 + $0x2d8] sm:$0xff]
    %v133 = vld [vmem:[#allocation2 + $0x2e0] sm:$0xff]
    %v134 = vld [vmem:[#allocation2 + $0x2e8] sm:$0xff]
    %v135 = vld [vmem:[#allocation2 + $0x2f0] sm:$0xff]
    %v136 = vld [vmem:[#allocation2 + $0x2f8] sm:$0xff]
    %v137 = vld [vmem:[#allocation2 + $0x300] sm:$0xff]
    %v138 = vld [vmem:[#allocation2 + $0x308] sm:$0xff]
    %v139 = vld [vmem:[#allocation2 + $0x310] sm:$0xff]
    %v140 = vld [vmem:[#allocation2 + $0x318] sm:$0xff]
    %v141 = vld [vmem:[#allocation2 + $0x320] sm:$0xff]
    %v142 = vld [vmem:[#allocation2 + $0x328] sm:$0xff]
    %v143 = vld [vmem:[#allocation2 + $0x330] sm:$0xff]
    %v144 = vld [vmem:[#allocation2 + $0x338] sm:$0xff]
    %v145 = vld [vmem:[#allocation2 + $0x340] sm:$0xff]
    %v146 = vld [vmem:[#allocation2 + $0x348] sm:$0xff]
    %v147 = vld [vmem:[#allocation2 + $0x350] sm:$0xff]
    %v148 = vld [vmem:[#allocation2 + $0x358] sm:$0xff]
    %v149 = vld [vmem:[#allocation2 + $0x360] sm:$0xff]
    %v150 = vld [vmem:[#allocation2 + $0x368] sm:$0xff]
    %v151 = vld [vmem:[#allocation2 + $0x370] sm:$0xff]
    %v152 = vld [vmem:[#allocation2 + $0x378] sm:$0xff]
    %v153 = vld [vmem:[#allocation2 + $0x380] sm:$0xff]
    %v154 = vld [vmem:[#allocation2 + $0x388] sm:$0xff]
    %v155 = vld [vmem:[#allocation2 + $0x390] sm:$0xff]
    %v156 = vld [vmem:[#allocation2 + $0x398] sm:$0xff]
    %v157 = vld [vmem:[#allocation2 + $0x3a0] sm:$0xff]
    %v158 = vld [vmem:[#allocation2 + $0x3a8] sm:$0xff]
    %v159 = vld [vmem:[#allocation2 + $0x3b0] sm:$0xff]
    %v160 = vld [vmem:[#allocation2 + $0x3b8] sm:$0xff]
    %v161 = vld [vmem:[#allocation2 + $0x3c0] sm:$0xff]
    %v162 = vld [vmem:[#allocation2 + $0x3c8] sm:$0xff]
    %v163 = vld [vmem:[#allocation2 + $0x3d0] sm:$0xff]
    %v164 = vld [vmem:[#allocation2 + $0x3d8] sm:$0xff]
    %v165 = vld [vmem:[#allocation2 + $0x3e0] sm:$0xff]
    %v166 = vld [vmem:[#allocation2 + $0x3e8] sm:$0xff]
    %v167 = vld [vmem:[#allocation2 + $0x3f0] sm:$0xff]
    %v168 = vld [vmem:[#allocation2 + $0x3f8] sm:$0xff]
    %v169 = vld [vmem:[#allocation2 + $0x400] sm:$0xff]
    %v170 = vld [vmem:[#allocation2 + $0x408] sm:$0xff]
    %v171 = vld [vmem:[#allocation2 + $0x410] sm:$0xff]
    %v172 = vld [vmem:[#allocation2 + $0x418] sm:$0xff]
    %v173 = vld [vmem:[#allocation2 + $0x420] sm:$0xff]
    %v174 = vld [vmem:[#allocation2 + $0x428] sm:$0xff]
    %v175 = vld [vmem:[#allocation2 + $0x430] sm:$0xff]
    %v176 = vld [vmem:[#allocation2 + $0x438] sm:$0xff]
    %v177 = vld [vmem:[#allocation2 + $0x440] sm:$0xff]
    %v178 = vld [vmem:[#allocation2 + $0x448] sm:$0xff]
    %v179 = vld [vmem:[#allocation2 + $0x450] sm:$0xff]
    %v180 = vld [vmem:[#allocation2 + $0x458] sm:$0xff]
    %v181 = vld [vmem:[#allocation2 + $0x460] sm:$0xff]
    %v182 = vld [vmem:[#allocation2 + $0x468] sm:$0xff]
    %v183 = vld [vmem:[#allocation2 + $0x470] sm:$0xff]
    %v184 = vld [vmem:[#allocation2 + $0x478] sm:$0xff]
    %v185 = vld [vmem:[#allocation2 + $0x480] sm:$0xf]
    %v186 = vld [vmem:[#allocation2 + $0x488] sm:$0xf]
    %v187 = vld [vmem:[#allocation2 + $0x490] sm:$0xf]
    %v188 = vld [vmem:[#allocation2 + $0x498] sm:$0xf]
    %v189 = vld [vmem:[#allocation2 + $0x4a0] sm:$0xf]
    %v190 = vld [vmem:[#allocation2 + $0x4a8] sm:$0xf]
    %v191 = vadd.f32 %v41, %v42
    %v192 = vadd.f32 %v47, %v48
    %v193 = vadd.f32 %v53, %v54
    %v194 = vadd.f32 %v59, %v60
    %v195 = vadd.f32 %v65, %v66
    %v196 = vadd.f32 %v71, %v72
    %v197 = vadd.f32 %v77, %v78
    %v198 = vadd.f32 %v83, %v84
    %v199 = vadd.f32 %v89, %v90
    %v200 = vadd.f32 %v95, %v96
    %v201 = vadd.f32 %v101, %v102
    %v202 = vadd.f32 %v107, %v108
    %v203 = vadd.f32 %v113, %v114
    %v204 = vadd.f32 %v119, %v120
    %v205 = vadd.f32 %v125, %v126
    %v206 = vadd.f32 %v131, %v132
    %v207 = vadd.f32 %v137, %v138
    %v208 = vadd.f32 %v143, %v144
    %v209 = vadd.f32 %v149, %v150
    %v210 = vadd.f32 %v155, %v156
    %v211 = vadd.f32 %v161, %v162
    %v212 = vadd.f32 %v167, %v168
    %v213 = vadd.f32 %v173, %v174
    %v214 = vadd.f32 %v179, %v180
    %v215 = vadd.f32 %v185, %v186
    %v216 = vadd.f32 %v191, %v43
    %v217 = vadd.f32 %v192, %v49
    %v218 = vadd.f32 %v193, %v55
    %v219 = vadd.f32 %v194, %v61
    %v220 = vadd.f32 %v195, %v67
    %v221 = vadd.f32 %v196, %v73
    %v222 = vadd.f32 %v197, %v79
    %v223 = vadd.f32 %v198, %v85
    %v224 = vadd.f32 %v199, %v91
    %v225 = vadd.f32 %v200, %v97
    %v226 = vadd.f32 %v201, %v103
    %v227 = vadd.f32 %v202, %v109
    %v228 = vadd.f32 %v203, %v115
    %v229 = vadd.f32 %v204, %v121
    %v230 = vadd.f32 %v205, %v127
    %v231 = vadd.f32 %v206, %v133
    %v232 = vadd.f32 %v207, %v139
    %v233 = vadd.f32 %v208, %v145
    %v234 = vadd.f32 %v209, %v151
    %v235 = vadd.f32 %v210, %v157
    %v236 = vadd.f32 %v211, %v163
    %v237 = vadd.f32 %v212, %v169
    %v238 = vadd.f32 %v213, %v175
    %v239 = vadd.f32 %v214, %v181
    %v240 = vadd.f32 %v215, %v187
    %v241 = vadd.f32 %v216, %v44
    %v242 = vadd.f32 %v217, %v50
    %v243 = vadd.f32 %v218, %v56
    %v244 = vadd.f32 %v219, %v62
    %v245 = vadd.f32 %v220, %v68
    %v246 = vadd.f32 %v221, %v74
    %v247 = vadd.f32 %v222, %v80
    %v248 = vadd.f32 %v223, %v86
    %v249 = vadd.f32 %v224, %v92
    %v250 = vadd.f32 %v225, %v98
    %v251 = vadd.f32 %v226, %v104
    %v252 = vadd.f32 %v227, %v110
    %v253 = vadd.f32 %v228, %v116
    %v254 = vadd.f32 %v229, %v122
    %v255 = vadd.f32 %v230, %v128
    %v256 = vadd.f32 %v231, %v134
    %v257 = vadd.f32 %v232, %v140
    %v258 = vadd.f32 %v233, %v146
    %v259 = vadd.f32 %v234, %v152
    %v260 = vadd.f32 %v235, %v158
    %v261 = vadd.f32 %v236, %v164
    %v262 = vadd.f32 %v237, %v170
    %v263 = vadd.f32 %v238, %v176
    %v264 = vadd.f32 %v239, %v182
    %v265 = vadd.f32 %v240, %v188
    %v266 = vadd.f32 %v241, %v45
    %v267 = vadd.f32 %v242, %v51
    %v268 = vadd.f32 %v243, %v57
    %v269 = vadd.f32 %v244, %v63
    %v270 = vadd.f32 %v245, %v69
    %v271 = vadd.f32 %v246, %v75
    %v272 = vadd.f32 %v247, %v81
    %v273 = vadd.f32 %v248, %v87
    %v274 = vadd.f32 %v249, %v93
    %v275 = vadd.f32 %v250, %v99
    %v276 = vadd.f32 %v251, %v105
    %v277 = vadd.f32 %v252, %v111
    %v278 = vadd.f32 %v253, %v117
    %v279 = vadd.f32 %v254, %v123
    %v280 = vadd.f32 %v255, %v129
    %v281 = vadd.f32 %v256, %v135
    %v282 = vadd.f32 %v257, %v141
    %v283 = vadd.f32 %v258, %v147
    %v284 = vadd.f32 %v259, %v153
    %v285 = vadd.f32 %v260, %v159
    %v286 = vadd.f32 %v261, %v165
    %v287 = vadd.f32 %v262, %v171
    %v288 = vadd.f32 %v263, %v177
    %v289 = vadd.f32 %v264, %v183
    %v290 = vadd.f32 %v265, %v189
    %v291 = vadd.f32 %v266, %v46
    %v292 = vadd.f32 %v267, %v52
    %v293 = vadd.f32 %v268, %v58
    %v294 = vadd.f32 %v269, %v64
    %v295 = vadd.f32 %v270, %v70
    %v296 = vadd.f32 %v271, %v76
    %v297 = vadd.f32 %v272, %v82
    %v298 = vadd.f32 %v273, %v88
    %v299 = vadd.f32 %v274, %v94
    %v300 = vadd.f32 %v275, %v100
    %v301 = vadd.f32 %v276, %v106
    %v302 = vadd.f32 %v277, %v112
    %v303 = vadd.f32 %v278, %v118
    %v304 = vadd.f32 %v279, %v124
    %v305 = vadd.f32 %v280, %v130
    %v306 = vadd.f32 %v281, %v136
    %v307 = vadd.f32 %v282, %v142
    %v308 = vadd.f32 %v283, %v148
    %v309 = vadd.f32 %v284, %v154
    %v310 = vadd.f32 %v285, %v160
    %v311 = vadd.f32 %v286, %v166
    %v312 = vadd.f32 %v287, %v172
    %v313 = vadd.f32 %v288, %v178
    %v314 = vadd.f32 %v289, %v184
    %v315 = vadd.f32 %v290, %v190
    %316 = vadd.xlane.f32.xlu0 %v291
    %v317 = vpop.xlane.xlu0 %316
    %318 = vadd.xlane.f32.xlu0 %v292
    %v319 = vpop.xlane.xlu0 %318
    %320 = vadd.xlane.f32.xlu0 %v293
    %v321 = vpop.xlane.xlu0 %320
    %322 = vadd.xlane.f32.xlu0 %v294
    %v323 = vpop.xlane.xlu0 %322
    %324 = vadd.xlane.f32.xlu0 %v295
    %v325 = vpop.xlane.xlu0 %324
    %326 = vadd.xlane.f32.xlu0 %v296
    %v327 = vpop.xlane.xlu0 %326
    %328 = vadd.xlane.f32.xlu0 %v297
    %v329 = vpop.xlane.xlu0 %328
    %330 = vadd.xlane.f32.xlu0 %v298
    %v331 = vpop.xlane.xlu0 %330
    %332 = vadd.xlane.f32.xlu0 %v299
    %v333 = vpop.xlane.xlu0 %332
    %334 = vadd.xlane.f32.xlu0 %v300
    %v335 = vpop.xlane.xlu0 %334
    %336 = vadd.xlane.f32.xlu0 %v301
    %v337 = vpop.xlane.xlu0 %336
    %338 = vadd.xlane.f32.xlu0 %v302
    %v339 = vpop.xlane.xlu0 %338
    %340 = vadd.xlane.f32.xlu0 %v303
    %v341 = vpop.xlane.xlu0 %340
    %342 = vadd.xlane.f32.xlu0 %v304
    %v343 = vpop.xlane.xlu0 %342
    %344 = vadd.xlane.f32.xlu0 %v305
    %v345 = vpop.xlane.xlu0 %344
    %346 = vadd.xlane.f32.xlu0 %v306
    %v347 = vpop.xlane.xlu0 %346
    %348 = vadd.xlane.f32.xlu0 %v307
    %v349 = vpop.xlane.xlu0 %348
    %350 = vadd.xlane.f32.xlu0 %v308
    %v351 = vpop.xlane.xlu0 %350
    %352 = vadd.xlane.f32.xlu0 %v309
    %v353 = vpop.xlane.xlu0 %352
    %354 = vadd.xlane.f32.xlu0 %v310
    %v355 = vpop.xlane.xlu0 %354
    %356 = vadd.xlane.f32.xlu0 %v311
    %v357 = vpop.xlane.xlu0 %356
    %358 = vadd.xlane.f32.xlu0 %v312
    %v359 = vpop.xlane.xlu0 %358
    %360 = vadd.xlane.f32.xlu0 %v313
    %v361 = vpop.xlane.xlu0 %360
    %362 = vadd.xlane.f32.xlu0 %v314
    %v363 = vpop.xlane.xlu0 %362
    %vm364 = vcmask 1043456
    %v365 = vsel %vm364, %v315, 0.0
    %366 = vadd.xlane.f32.xlu0 %v365
    %v367 = vpop.xlane.xlu0 %366
    %v368 = vmul.f32 %v317, 0.0013020834
    %v369 = vmul.f32 %v319, 0.0013020834
    %v370 = vmul.f32 %v321, 0.0013020834
    %v371 = vmul.f32 %v323, 0.0013020834
    %v372 = vmul.f32 %v325, 0.0013020834
    %v373 = vmul.f32 %v327, 0.0013020834
    %v374 = vmul.f32 %v329, 0.0013020834
    %v375 = vmul.f32 %v331, 0.0013020834
    %v376 = vmul.f32 %v333, 0.0013020834
    %v377 = vmul.f32 %v335, 0.0013020834
    %v378 = vmul.f32 %v337, 0.0013020834
    %v379 = vmul.f32 %v339, 0.0013020834
    %v380 = vmul.f32 %v341, 0.0013020834
    %v381 = vmul.f32 %v343, 0.0013020834
    %v382 = vmul.f32 %v345, 0.0013020834
    %v383 = vmul.f32 %v347, 0.0013020834
    %v384 = vmul.f32 %v349, 0.0013020834
    %v385 = vmul.f32 %v351, 0.0013020834
    %v386 = vmul.f32 %v353, 0.0013020834
    %v387 = vmul.f32 %v355, 0.0013020834
    %v388 = vmul.f32 %v357, 0.0013020834
    %v389 = vmul.f32 %v359, 0.0013020834
    %v390 = vmul.f32 %v361, 0.0013020834
    %v391 = vmul.f32 %v363, 0.0013020834
    %v392 = vmul.f32 %v367, 0.0013020834
    %v393 = vsub.f32 %v41, %v368
    %v394 = vsub.f32 %v42, %v368
    %v395 = vsub.f32 %v43, %v368
    %v396 = vsub.f32 %v44, %v368
    %v397 = vsub.f32 %v45, %v368
    %v398 = vsub.f32 %v46, %v368
    %v399 = vsub.f32 %v47, %v369
    %v400 = vsub.f32 %v48, %v369
    %v401 = vsub.f32 %v49, %v369
    %v402 = vsub.f32 %v50, %v369
    %v403 = vsub.f32 %v51, %v369
    %v404 = vsub.f32 %v52, %v369
    %v405 = vsub.f32 %v53, %v370
    %v406 = vsub.f32 %v54, %v370
    %v407 = vsub.f32 %v55, %v370
    %v408 = vsub.f32 %v56, %v370
    %v409 = vsub.f32 %v57, %v370
    %v410 = vsub.f32 %v58, %v370
    %v411 = vsub.f32 %v59, %v371
    %v412 = vsub.f32 %v60, %v371
    %v413 = vsub.f32 %v61, %v371
    %v414 = vsub.f32 %v62, %v371
    %v415 = vsub.f32 %v63, %v371
    %v416 = vsub.f32 %v64, %v371
    %v417 = vsub.f32 %v65, %v372
    %v418 = vsub.f32 %v66, %v372
    %v419 = vsub.f32 %v67, %v372
    %v420 = vsub.f32 %v68, %v372
    %v421 = vsub.f32 %v69, %v372
    %v422 = vsub.f32 %v70, %v372
    %v423 = vsub.f32 %v71, %v373
    %v424 = vsub.f32 %v72, %v373
    %v425 = vsub.f32 %v73, %v373
    %v426 = vsub.f32 %v74, %v373
    %v427 = vsub.f32 %v75, %v373
    %v428 = vsub.f32 %v76, %v373
    %v429 = vsub.f32 %v77, %v374
    %v430 = vsub.f32 %v78, %v374
    %v431 = vsub.f32 %v79, %v374
    %v432 = vsub.f32 %v80, %v374
    %v433 = vsub.f32 %v81, %v374
    %v434 = vsub.f32 %v82, %v374
    %v435 = vsub.f32 %v83, %v375
    %v436 = vsub.f32 %v84, %v375
    %v437 = vsub.f32 %v85, %v375
    %v438 = vsub.f32 %v86, %v375
    %v439 = vsub.f32 %v87, %v375
    %v440 = vsub.f32 %v88, %v375
    %v441 = vsub.f32 %v89, %v376
    %v442 = vsub.f32 %v90, %v376
    %v443 = vsub.f32 %v91, %v376
    %v444 = vsub.f32 %v92, %v376
    %v445 = vsub.f32 %v93, %v376
    %v446 = vsub.f32 %v94, %v376
    %v447 = vsub.f32 %v95, %v377
    %v448 = vsub.f32 %v96, %v377
    %v449 = vsub.f32 %v97, %v377
    %v450 = vsub.f32 %v98, %v377
    %v451 = vsub.f32 %v99, %v377
    %v452 = vsub.f32 %v100, %v377
    %v453 = vsub.f32 %v101, %v378
    %v454 = vsub.f32 %v102, %v378
    %v455 = vsub.f32 %v103, %v378
    %v456 = vsub.f32 %v104, %v378
    %v457 = vsub.f32 %v105, %v378
    %v458 = vsub.f32 %v106, %v378
    %v459 = vsub.f32 %v107, %v379
    %v460 = vsub.f32 %v108, %v379
    %v461 = vsub.f32 %v109, %v379
    %v462 = vsub.f32 %v110, %v379
    %v463 = vsub.f32 %v111, %v379
    %v464 = vsub.f32 %v112, %v379
    %v465 = vsub.f32 %v113, %v380
    %v466 = vsub.f32 %v114, %v380
    %v467 = vsub.f32 %v115, %v380
    %v468 = vsub.f32 %v116, %v380
    %v469 = vsub.f32 %v117, %v380
    %v470 = vsub.f32 %v118, %v380
    %v471 = vsub.f32 %v119, %v381
    %v472 = vsub.f32 %v120, %v381
    %v473 = vsub.f32 %v121, %v381
    %v474 = vsub.f32 %v122, %v381
    %v475 = vsub.f32 %v123, %v381
    %v476 = vsub.f32 %v124, %v381
    %v477 = vsub.f32 %v125, %v382
    %v478 = vsub.f32 %v126, %v382
    %v479 = vsub.f32 %v127, %v382
    %v480 = vsub.f32 %v128, %v382
    %v481 = vsub.f32 %v129, %v382
    %v482 = vsub.f32 %v130, %v382
    %v483 = vsub.f32 %v131, %v383
    %v484 = vsub.f32 %v132, %v383
    %v485 = vsub.f32 %v133, %v383
    %v486 = vsub.f32 %v134, %v383
    %v487 = vsub.f32 %v135, %v383
    %v488 = vsub.f32 %v136, %v383
    %v489 = vsub.f32 %v137, %v384
    %v490 = vsub.f32 %v138, %v384
    %v491 = vsub.f32 %v139, %v384
    %v492 = vsub.f32 %v140, %v384
    %v493 = vsub.f32 %v141, %v384
    %v494 = vsub.f32 %v142, %v384
    %v495 = vsub.f32 %v143, %v385
    %v496 = vsub.f32 %v144, %v385
    %v497 = vsub.f32 %v145, %v385
    %v498 = vsub.f32 %v146, %v385
    %v499 = vsub.f32 %v147, %v385
    %v500 = vsub.f32 %v148, %v385
    %v501 = vsub.f32 %v149, %v386
    %v502 = vsub.f32 %v150, %v386
    %v503 = vsub.f32 %v151, %v386
    %v504 = vsub.f32 %v152, %v386
    %v505 = vsub.f32 %v153, %v386
    %v506 = vsub.f32 %v154, %v386
    %v507 = vsub.f32 %v155, %v387
    %v508 = vsub.f32 %v156, %v387
    %v509 = vsub.f32 %v157, %v387
    %v510 = vsub.f32 %v158, %v387
    %v511 = vsub.f32 %v159, %v387
    %v512 = vsub.f32 %v160, %v387
    %v513 = vsub.f32 %v161, %v388
    %v514 = vsub.f32 %v162, %v388
    %v515 = vsub.f32 %v163, %v388
    %v516 = vsub.f32 %v164, %v388
    %v517 = vsub.f32 %v165, %v388
    %v518 = vsub.f32 %v166, %v388
    %v519 = vsub.f32 %v167, %v389
    %v520 = vsub.f32 %v168, %v389
    %v521 = vsub.f32 %v169, %v389
    %v522 = vsub.f32 %v170, %v389
    %v523 = vsub.f32 %v171, %v389
    %v524 = vsub.f32 %v172, %v389
    %v525 = vsub.f32 %v173, %v390
    %v526 = vsub.f32 %v174, %v390
    %v527 = vsub.f32 %v175, %v390
    %v528 = vsub.f32 %v176, %v390
    %v529 = vsub.f32 %v177, %v390
    %v530 = vsub.f32 %v178, %v390
    %v531 = vsub.f32 %v179, %v391
    %v532 = vsub.f32 %v180, %v391
    %v533 = vsub.f32 %v181, %v391
    %v534 = vsub.f32 %v182, %v391
    %v535 = vsub.f32 %v183, %v391
    %v536 = vsub.f32 %v184, %v391
    %v537 = vsub.f32 %v185, %v392
    %v538 = vsub.f32 %v186, %v392
    %v539 = vsub.f32 %v187, %v392
    %v540 = vsub.f32 %v188, %v392
    %v541 = vsub.f32 %v189, %v392
    %v542 = vsub.f32 %v190, %v392
    %v543 = vmul.f32 %v393, %v393
    %v544 = vmul.f32 %v399, %v399
    %v545 = vmul.f32 %v405, %v405
    %v546 = vmul.f32 %v411, %v411
    %v547 = vmul.f32 %v417, %v417
    %v548 = vmul.f32 %v423, %v423
    %v549 = vmul.f32 %v429, %v429
    %v550 = vmul.f32 %v435, %v435
    %v551 = vmul.f32 %v441, %v441
    %v552 = vmul.f32 %v447, %v447
    %v553 = vmul.f32 %v453, %v453
    %v554 = vmul.f32 %v459, %v459
    %v555 = vmul.f32 %v465, %v465
    %v556 = vmul.f32 %v471, %v471
    %v557 = vmul.f32 %v477, %v477
    %v558 = vmul.f32 %v483, %v483
    %v559 = vmul.f32 %v489, %v489
    %v560 = vmul.f32 %v495, %v495
    %v561 = vmul.f32 %v501, %v501
    %v562 = vmul.f32 %v507, %v507
    %v563 = vmul.f32 %v513, %v513
    %v564 = vmul.f32 %v519, %v519
    %v565 = vmul.f32 %v525, %v525
    %v566 = vmul.f32 %v531, %v531
    %v567 = vmul.f32 %v537, %v537
    %v568 = vmul.f32 %v394, %v394
    %v569 = vmul.f32 %v400, %v400
    %v570 = vmul.f32 %v406, %v406
    %v571 = vmul.f32 %v412, %v412
    %v572 = vmul.f32 %v418, %v418
    %v573 = vmul.f32 %v424, %v424
    %v574 = vmul.f32 %v430, %v430
    %v575 = vmul.f32 %v436, %v436
    %v576 = vmul.f32 %v442, %v442
    %v577 = vmul.f32 %v448, %v448
    %v578 = vmul.f32 %v454, %v454
    %v579 = vmul.f32 %v460, %v460
    %v580 = vmul.f32 %v466, %v466
    %v581 = vmul.f32 %v472, %v472
    %v582 = vmul.f32 %v478, %v478
    %v583 = vmul.f32 %v484, %v484
    %v584 = vmul.f32 %v490, %v490
    %v585 = vmul.f32 %v496, %v496
    %v586 = vmul.f32 %v502, %v502
    %v587 = vmul.f32 %v508, %v508
    %v588 = vmul.f32 %v514, %v514
    %v589 = vmul.f32 %v520, %v520
    %v590 = vmul.f32 %v526, %v526
    %v591 = vmul.f32 %v532, %v532
    %v592 = vmul.f32 %v538, %v538
    %v593 = vadd.f32 %v543, %v568
    %v594 = vadd.f32 %v544, %v569
    %v595 = vadd.f32 %v545, %v570
    %v596 = vadd.f32 %v546, %v571
    %v597 = vadd.f32 %v547, %v572
    %v598 = vadd.f32 %v548, %v573
    %v599 = vadd.f32 %v549, %v574
    %v600 = vadd.f32 %v550, %v575
    %v601 = vadd.f32 %v551, %v576
    %v602 = vadd.f32 %v552, %v577
    %v603 = vadd.f32 %v553, %v578
    %v604 = vadd.f32 %v554, %v579
    %v605 = vadd.f32 %v555, %v580
    %v606 = vadd.f32 %v556, %v581
    %v607 = vadd.f32 %v557, %v582
    %v608 = vadd.f32 %v558, %v583
    %v609 = vadd.f32 %v559, %v584
    %v610 = vadd.f32 %v560, %v585
    %v611 = vadd.f32 %v561, %v586
    %v612 = vadd.f32 %v562, %v587
    %v613 = vadd.f32 %v563, %v588
    %v614 = vadd.f32 %v564, %v589
    %v615 = vadd.f32 %v565, %v590
    %v616 = vadd.f32 %v566, %v591
    %v617 = vadd.f32 %v567, %v592
    %v618 = vmul.f32 %v395, %v395
    %v619 = vmul.f32 %v401, %v401
    %v620 = vmul.f32 %v407, %v407
    %v621 = vmul.f32 %v413, %v413
    %v622 = vmul.f32 %v419, %v419
    %v623 = vmul.f32 %v425, %v425
    %v624 = vmul.f32 %v431, %v431
    %v625 = vmul.f32 %v437, %v437
    %v626 = vmul.f32 %v443, %v443
    %v627 = vmul.f32 %v449, %v449
    %v628 = vmul.f32 %v455, %v455
    %v629 = vmul.f32 %v461, %v461
    %v630 = vmul.f32 %v467, %v467
    %v631 = vmul.f32 %v473, %v473
    %v632 = vmul.f32 %v479, %v479
    %v633 = vmul.f32 %v485, %v485
    %v634 = vmul.f32 %v491, %v491
    %v635 = vmul.f32 %v497, %v497
    %v636 = vmul.f32 %v503, %v503
    %v637 = vmul.f32 %v509, %v509
    %v638 = vmul.f32 %v515, %v515
    %v639 = vmul.f32 %v521, %v521
    %v640 = vmul.f32 %v527, %v527
    %v641 = vmul.f32 %v533, %v533
    %v642 = vmul.f32 %v539, %v539
    %v643 = vadd.f32 %v593, %v618
    %v644 = vadd.f32 %v594, %v619
    %v645 = vadd.f32 %v595, %v620
    %v646 = vadd.f32 %v596, %v621
    %v647 = vadd.f32 %v597, %v622
    %v648 = vadd.f32 %v598, %v623
    %v649 = vadd.f32 %v599, %v624
    %v650 = vadd.f32 %v600, %v625
    %v651 = vadd.f32 %v601, %v626
    %v652 = vadd.f32 %v602, %v627
    %v653 = vadd.f32 %v603, %v628
    %v654 = vadd.f32 %v604, %v629
    %v655 = vadd.f32 %v605, %v630
    %v656 = vadd.f32 %v606, %v631
    %v657 = vadd.f32 %v607, %v632
    %v658 = vadd.f32 %v608, %v633
    %v659 = vadd.f32 %v609, %v634
    %v660 = vadd.f32 %v610, %v635
    %v661 = vadd.f32 %v611, %v636
    %v662 = vadd.f32 %v612, %v637
    %v663 = vadd.f32 %v613, %v638
    %v664 = vadd.f32 %v614, %v639
    %v665 = vadd.f32 %v615, %v640
    %v666 = vadd.f32 %v616, %v641
    %v667 = vadd.f32 %v617, %v642
    %v668 = vmul.f32 %v396, %v396
    %v669 = vmul.f32 %v402, %v402
    %v670 = vmul.f32 %v408, %v408
    %v671 = vmul.f32 %v414, %v414
    %v672 = vmul.f32 %v420, %v420
    %v673 = vmul.f32 %v426, %v426
    %v674 = vmul.f32 %v432, %v432
    %v675 = vmul.f32 %v438, %v438
    %v676 = vmul.f32 %v444, %v444
    %v677 = vmul.f32 %v450, %v450
    %v678 = vmul.f32 %v456, %v456
    %v679 = vmul.f32 %v462, %v462
    %v680 = vmul.f32 %v468, %v468
    %v681 = vmul.f32 %v474, %v474
    %v682 = vmul.f32 %v480, %v480
    %v683 = vmul.f32 %v486, %v486
    %v684 = vmul.f32 %v492, %v492
    %v685 = vmul.f32 %v498, %v498
    %v686 = vmul.f32 %v504, %v504
    %v687 = vmul.f32 %v510, %v510
    %v688 = vmul.f32 %v516, %v516
    %v689 = vmul.f32 %v522, %v522
    %v690 = vmul.f32 %v528, %v528
    %v691 = vmul.f32 %v534, %v534
    %v692 = vmul.f32 %v540, %v540
    %v693 = vadd.f32 %v643, %v668
    %v694 = vadd.f32 %v644, %v669
    %v695 = vadd.f32 %v645, %v670
    %v696 = vadd.f32 %v646, %v671
    %v697 = vadd.f32 %v647, %v672
    %v698 = vadd.f32 %v648, %v673
    %v699 = vadd.f32 %v649, %v674
    %v700 = vadd.f32 %v650, %v675
    %v701 = vadd.f32 %v651, %v676
    %v702 = vadd.f32 %v652, %v677
    %v703 = vadd.f32 %v653, %v678
    %v704 = vadd.f32 %v654, %v679
    %v705 = vadd.f32 %v655, %v680
    %v706 = vadd.f32 %v656, %v681
    %v707 = vadd.f32 %v657, %v682
    %v708 = vadd.f32 %v658, %v683
    %v709 = vadd.f32 %v659, %v684
    %v710 = vadd.f32 %v660, %v685
    %v711 = vadd.f32 %v661, %v686
    %v712 = vadd.f32 %v662, %v687
    %v713 = vadd.f32 %v663, %v688
    %v714 = vadd.f32 %v664, %v689
    %v715 = vadd.f32 %v665, %v690
    %v716 = vadd.f32 %v666, %v691
    %v717 = vadd.f32 %v667, %v692
    %v718 = vmul.f32 %v397, %v397
    %v719 = vmul.f32 %v403, %v403
    %v720 = vmul.f32 %v409, %v409
    %v721 = vmul.f32 %v415, %v415
    %v722 = vmul.f32 %v421, %v421
    %v723 = vmul.f32 %v427, %v427
    %v724 = vmul.f32 %v433, %v433
    %v725 = vmul.f32 %v439, %v439
    %v726 = vmul.f32 %v445, %v445
    %v727 = vmul.f32 %v451, %v451
    %v728 = vmul.f32 %v457, %v457
    %v729 = vmul.f32 %v463, %v463
    %v730 = vmul.f32 %v469, %v469
    %v731 = vmul.f32 %v475, %v475
    %v732 = vmul.f32 %v481, %v481
    %v733 = vmul.f32 %v487, %v487
    %v734 = vmul.f32 %v493, %v493
    %v735 = vmul.f32 %v499, %v499
    %v736 = vmul.f32 %v505, %v505
    %v737 = vmul.f32 %v511, %v511
    %v738 = vmul.f32 %v517, %v517
    %v739 = vmul.f32 %v523, %v523
    %v740 = vmul.f32 %v529, %v529
    %v741 = vmul.f32 %v535, %v535
    %v742 = vmul.f32 %v541, %v541
    %v743 = vadd.f32 %v693, %v718
    %v744 = vadd.f32 %v694, %v719
    %v745 = vadd.f32 %v695, %v720
    %v746 = vadd.f32 %v696, %v721
    %v747 = vadd.f32 %v697, %v722
    %v748 = vadd.f32 %v698, %v723
    %v749 = vadd.f32 %v699, %v724
    %v750 = vadd.f32 %v700, %v725
    %v751 = vadd.f32 %v701, %v726
    %v752 = vadd.f32 %v702, %v727
    %v753 = vadd.f32 %v703, %v728
    %v754 = vadd.f32 %v704, %v729
    %v755 = vadd.f32 %v705, %v730
    %v756 = vadd.f32 %v706, %v731
    %v757 = vadd.f32 %v707, %v732
    %v758 = vadd.f32 %v708, %v733
    %v759 = vadd.f32 %v709, %v734
    %v760 = vadd.f32 %v710, %v735
    %v761 = vadd.f32 %v711, %v736
    %v762 = vadd.f32 %v712, %v737
    %v763 = vadd.f32 %v713, %v738
    %v764 = vadd.f32 %v714, %v739
    %v765 = vadd.f32 %v715, %v740
    %v766 = vadd.f32 %v716, %v741
    %v767 = vadd.f32 %v717, %v742
    %v768 = vmul.f32 %v398, %v398
    %v769 = vmul.f32 %v404, %v404
    %v770 = vmul.f32 %v410, %v410
    %v771 = vmul.f32 %v416, %v416
    %v772 = vmul.f32 %v422, %v422
    %v773 = vmul.f32 %v428, %v428
    %v774 = vmul.f32 %v434, %v434
    %v775 = vmul.f32 %v440, %v440
    %v776 = vmul.f32 %v446, %v446
    %v777 = vmul.f32 %v452, %v452
    %v778 = vmul.f32 %v458, %v458
    %v779 = vmul.f32 %v464, %v464
    %v780 = vmul.f32 %v470, %v470
    %v781 = vmul.f32 %v476, %v476
    %v782 = vmul.f32 %v482, %v482
    %v783 = vmul.f32 %v488, %v488
    %v784 = vmul.f32 %v494, %v494
    %v785 = vmul.f32 %v500, %v500
    %v786 = vmul.f32 %v506, %v506
    %v787 = vmul.f32 %v512, %v512
    %v788 = vmul.f32 %v518, %v518
    %v789 = vmul.f32 %v524, %v524
    %v790 = vmul.f32 %v530, %v530
    %v791 = vmul.f32 %v536, %v536
    %v792 = vmul.f32 %v542, %v542
    %v793 = vadd.f32 %v743, %v768
    %v794 = vadd.f32 %v744, %v769
    %v795 = vadd.f32 %v745, %v770
    %v796 = vadd.f32 %v746, %v771
    %v797 = vadd.f32 %v747, %v772
    %v798 = vadd.f32 %v748, %v773
    %v799 = vadd.f32 %v749, %v774
    %v800 = vadd.f32 %v750, %v775
    %v801 = vadd.f32 %v751, %v776
    %v802 = vadd.f32 %v752, %v777
    %v803 = vadd.f32 %v753, %v778
    %v804 = vadd.f32 %v754, %v779
    %v805 = vadd.f32 %v755, %v780
    %v806 = vadd.f32 %v756, %v781
    %v807 = vadd.f32 %v757, %v782
    %v808 = vadd.f32 %v758, %v783
    %v809 = vadd.f32 %v759, %v784
    %v810 = vadd.f32 %v760, %v785
    %v811 = vadd.f32 %v761, %v786
    %v812 = vadd.f32 %v762, %v787
    %v813 = vadd.f32 %v763, %v788
    %v814 = vadd.f32 %v764, %v789
    %v815 = vadd.f32 %v765, %v790
    %v816 = vadd.f32 %v766, %v791
    %v817 = vadd.f32 %v767, %v792
    %818 = vadd.xlane.f32.xlu0 %v793
    %v819 = vpop.xlane.xlu0 %818
    %820 = vadd.xlane.f32.xlu0 %v794
    %v821 = vpop.xlane.xlu0 %820
    %822 = vadd.xlane.f32.xlu0 %v795
    %v823 = vpop.xlane.xlu0 %822
    %824 = vadd.xlane.f32.xlu0 %v796
    %v825 = vpop.xlane.xlu0 %824
    %826 = vadd.xlane.f32.xlu0 %v797
    %v827 = vpop.xlane.xlu0 %826
    %828 = vadd.xlane.f32.xlu0 %v798
    %v829 = vpop.xlane.xlu0 %828
    %830 = vadd.xlane.f32.xlu0 %v799
    %v831 = vpop.xlane.xlu0 %830
    %832 = vadd.xlane.f32.xlu0 %v800
    %v833 = vpop.xlane.xlu0 %832
    %834 = vadd.xlane.f32.xlu0 %v801
    %v835 = vpop.xlane.xlu0 %834
    %836 = vadd.xlane.f32.xlu0 %v802
    %v837 = vpop.xlane.xlu0 %836
    %838 = vadd.xlane.f32.xlu0 %v803
    %v839 = vpop.xlane.xlu0 %838
    %840 = vadd.xlane.f32.xlu0 %v804
    %v841 = vpop.xlane.xlu0 %840
    %842 = vadd.xlane.f32.xlu0 %v805
    %v843 = vpop.xlane.xlu0 %842
    %844 = vadd.xlane.f32.xlu0 %v806
    %v845 = vpop.xlane.xlu0 %844
    %846 = vadd.xlane.f32.xlu0 %v807
    %v847 = vpop.xlane.xlu0 %846
    %848 = vadd.xlane.f32.xlu0 %v808
    %v849 = vpop.xlane.xlu0 %848
    %850 = vadd.xlane.f32.xlu0 %v809
    %v851 = vpop.xlane.xlu0 %850
    %852 = vadd.xlane.f32.xlu0 %v810
    %v853 = vpop.xlane.xlu0 %852
    %854 = vadd.xlane.f32.xlu0 %v811
    %v855 = vpop.xlane.xlu0 %854
    %856 = vadd.xlane.f32.xlu0 %v812
    %v857 = vpop.xlane.xlu0 %856
    %858 = vadd.xlane.f32.xlu0 %v813
    %v859 = vpop.xlane.xlu0 %858
    %860 = vadd.xlane.f32.xlu0 %v814
    %v861 = vpop.xlane.xlu0 %860
    %862 = vadd.xlane.f32.xlu0 %v815
    %v863 = vpop.xlane.xlu0 %862
    %864 = vadd.xlane.f32.xlu0 %v816
    %v865 = vpop.xlane.xlu0 %864
    %v866 = vsel %vm364, %v817, 0.0
    %867 = vadd.xlane.f32.xlu0 %v866
    %v868 = vpop.xlane.xlu0 %867
    %v869 = vmul.f32 %v819, 0.0013020834
    %v870 = vmul.f32 %v821, 0.0013020834
    %v871 = vmul.f32 %v823, 0.0013020834
    %v872 = vmul.f32 %v825, 0.0013020834
    %v873 = vmul.f32 %v827, 0.0013020834
    %v874 = vmul.f32 %v829, 0.0013020834
    %v875 = vmul.f32 %v831, 0.0013020834
    %v876 = vmul.f32 %v833, 0.0013020834
    %v877 = vmul.f32 %v835, 0.0013020834
    %v878 = vmul.f32 %v837, 0.0013020834
    %v879 = vmul.f32 %v839, 0.0013020834
    %v880 = vmul.f32 %v841, 0.0013020834
    %v881 = vmul.f32 %v843, 0.0013020834
    %v882 = vmul.f32 %v845, 0.0013020834
    %v883 = vmul.f32 %v847, 0.0013020834
    %v884 = vmul.f32 %v849, 0.0013020834
    %v885 = vmul.f32 %v851, 0.0013020834
    %v886 = vmul.f32 %v853, 0.0013020834
    %v887 = vmul.f32 %v855, 0.0013020834
    %v888 = vmul.f32 %v857, 0.0013020834
    %v889 = vmul.f32 %v859, 0.0013020834
    %v890 = vmul.f32 %v861, 0.0013020834
    %v891 = vmul.f32 %v863, 0.0013020834
    %v892 = vmul.f32 %v865, 0.0013020834
    %v893 = vmul.f32 %v868, 0.0013020834
    %v894 = vadd.f32 %v869, 1e-06
    %v895 = vadd.f32 %v870, 1e-06
    %v896 = vadd.f32 %v871, 1e-06
    %v897 = vadd.f32 %v872, 1e-06
    %v898 = vadd.f32 %v873, 1e-06
    %v899 = vadd.f32 %v874, 1e-06
    %v900 = vadd.f32 %v875, 1e-06
    %v901 = vadd.f32 %v876, 1e-06
    %v902 = vadd.f32 %v877, 1e-06
    %v903 = vadd.f32 %v878, 1e-06
    %v904 = vadd.f32 %v879, 1e-06
    %v905 = vadd.f32 %v880, 1e-06
    %v906 = vadd.f32 %v881, 1e-06
    %v907 = vadd.f32 %v882, 1e-06
    %v908 = vadd.f32 %v883, 1e-06
    %v909 = vadd.f32 %v884, 1e-06
    %v910 = vadd.f32 %v885, 1e-06
    %v911 = vadd.f32 %v886, 1e-06
    %v912 = vadd.f32 %v887, 1e-06
    %v913 = vadd.f32 %v888, 1e-06
    %v914 = vadd.f32 %v889, 1e-06
    %v915 = vadd.f32 %v890, 1e-06
    %v916 = vadd.f32 %v891, 1e-06
    %v917 = vadd.f32 %v892, 1e-06
    %v918 = vadd.f32 %v893, 1e-06
    %v919 = vrsqrt.pop %v894
    %v920 = vrsqrt.pop %v895
    %v921 = vrsqrt.pop %v896
    %v922 = vrsqrt.pop %v897
    %v923 = vrsqrt.pop %v898
    %v924 = vrsqrt.pop %v899
    %v925 = vrsqrt.pop %v900
    %v926 = vrsqrt.pop %v901
    %v927 = vrsqrt.pop %v902
    %v928 = vrsqrt.pop %v903
    %v929 = vrsqrt.pop %v904
    %v930 = vrsqrt.pop %v905
    %v931 = vrsqrt.pop %v906
    %v932 = vrsqrt.pop %v907
    %v933 = vrsqrt.pop %v908
    %v934 = vrsqrt.pop %v909
    %v935 = vrsqrt.pop %v910
    %v936 = vrsqrt.pop %v911
    %v937 = vrsqrt.pop %v912
    %v938 = vrsqrt.pop %v913
    %v939 = vrsqrt.pop %v914
    %v940 = vrsqrt.pop %v915
    %v941 = vrsqrt.pop %v916
    %v942 = vrsqrt.pop %v917
    %v943 = vrsqrt.pop %v918
    %v944 = vld [vmem:[#allocation5] sm:$0x3f]
    %v945 = vld [vmem:[%s2] sm:$0x3f]
    %v946 = vmul.f32 %v393, %v919
    %v947 = vmul.f32 %v394, %v919
    %v948 = vmul.f32 %v395, %v919
    %v949 = vmul.f32 %v396, %v919
    %v950 = vmul.f32 %v397, %v919
    %v951 = vmul.f32 %v398, %v919
    %v952 = vmul.f32 %v399, %v920
    %v953 = vmul.f32 %v400, %v920
    %v954 = vmul.f32 %v401, %v920
    %v955 = vmul.f32 %v402, %v920
    %v956 = vmul.f32 %v403, %v920
    %v957 = vmul.f32 %v404, %v920
    %v958 = vmul.f32 %v405, %v921
    %v959 = vmul.f32 %v406, %v921
    %v960 = vmul.f32 %v407, %v921
    %v961 = vmul.f32 %v408, %v921
    %v962 = vmul.f32 %v409, %v921
    %v963 = vmul.f32 %v410, %v921
    %v964 = vmul.f32 %v411, %v922
    %v965 = vmul.f32 %v412, %v922
    %v966 = vmul.f32 %v413, %v922
    %v967 = vmul.f32 %v414, %v922
    %v968 = vmul.f32 %v415, %v922
    %v969 = vmul.f32 %v416, %v922
    %v970 = vmul.f32 %v417, %v923
    %v971 = vmul.f32 %v418, %v923
    %v972 = vmul.f32 %v419, %v923
    %v973 = vmul.f32 %v420, %v923
    %v974 = vmul.f32 %v421, %v923
    %v975 = vmul.f32 %v422, %v923
    %v976 = vmul.f32 %v423, %v924
    %v977 = vmul.f32 %v424, %v924
    %v978 = vmul.f32 %v425, %v924
    %v979 = vmul.f32 %v426, %v924
    %v980 = vmul.f32 %v427, %v924
    %v981 = vmul.f32 %v428, %v924
    %v982 = vmul.f32 %v429, %v925
    %v983 = vmul.f32 %v430, %v925
    %v984 = vmul.f32 %v431, %v925
    %v985 = vmul.f32 %v432, %v925
    %v986 = vmul.f32 %v433, %v925
    %v987 = vmul.f32 %v434, %v925
    %v988 = vmul.f32 %v435, %v926
    %v989 = vmul.f32 %v436, %v926
    %v990 = vmul.f32 %v437, %v926
    %v991 = vmul.f32 %v438, %v926
    %v992 = vmul.f32 %v439, %v926
    %v993 = vmul.f32 %v440, %v926
    %v994 = vmul.f32 %v441, %v927
    %v995 = vmul.f32 %v442, %v927
    %v996 = vmul.f32 %v443, %v927
    %v997 = vmul.f32 %v444, %v927
    %v998 = vmul.f32 %v445, %v927
    %v999 = vmul.f32 %v446, %v927
    %v1000 = vmul.f32 %v447, %v928
    %v1001 = vmul.f32 %v448, %v928
    %v1002 = vmul.f32 %v449, %v928
    %v1003 = vmul.f32 %v450, %v928
    %v1004 = vmul.f32 %v451, %v928
    %v1005 = vmul.f32 %v452, %v928
    %v1006 = vmul.f32 %v453, %v929
    %v1007 = vmul.f32 %v454, %v929
    %v1008 = vmul.f32 %v455, %v929
    %v1009 = vmul.f32 %v456, %v929
    %v1010 = vmul.f32 %v457, %v929
    %v1011 = vmul.f32 %v458, %v929
    %v1012 = vmul.f32 %v459, %v930
    %v1013 = vmul.f32 %v460, %v930
    %v1014 = vmul.f32 %v461, %v930
    %v1015 = vmul.f32 %v462, %v930
    %v1016 = vmul.f32 %v463, %v930
    %v1017 = vmul.f32 %v464, %v930
    %v1018 = vmul.f32 %v465, %v931
    %v1019 = vmul.f32 %v466, %v931
    %v1020 = vmul.f32 %v467, %v931
    %v1021 = vmul.f32 %v468, %v931
    %v1022 = vmul.f32 %v469, %v931
    %v1023 = vmul.f32 %v470, %v931
    %v1024 = vmul.f32 %v471, %v932
    %v1025 = vmul.f32 %v472, %v932
    %v1026 = vmul.f32 %v473, %v932
    %v1027 = vmul.f32 %v474, %v932
    %v1028 = vmul.f32 %v475, %v932
    %v1029 = vmul.f32 %v476, %v932
    %v1030 = vmul.f32 %v477, %v933
    %v1031 = vmul.f32 %v478, %v933
    %v1032 = vmul.f32 %v479, %v933
    %v1033 = vmul.f32 %v480, %v933
    %v1034 = vmul.f32 %v481, %v933
    %v1035 = vmul.f32 %v482, %v933
    %v1036 = vmul.f32 %v483, %v934
    %v1037 = vmul.f32 %v484, %v934
    %v1038 = vmul.f32 %v485, %v934
    %v1039 = vmul.f32 %v486, %v934
    %v1040 = vmul.f32 %v487, %v934
    %v1041 = vmul.f32 %v488, %v934
    %v1042 = vmul.f32 %v489, %v935
    %v1043 = vmul.f32 %v490, %v935
    %v1044 = vmul.f32 %v491, %v935
    %v1045 = vmul.f32 %v492, %v935
    %v1046 = vmul.f32 %v493, %v935
    %v1047 = vmul.f32 %v494, %v935
    %v1048 = vmul.f32 %v495, %v936
    %v1049 = vmul.f32 %v496, %v936
    %v1050 = vmul.f32 %v497, %v936
    %v1051 = vmul.f32 %v498, %v936
    %v1052 = vmul.f32 %v499, %v936
    %v1053 = vmul.f32 %v500, %v936
    %v1054 = vmul.f32 %v501, %v937
    %v1055 = vmul.f32 %v502, %v937
    %v1056 = vmul.f32 %v503, %v937
    %v1057 = vmul.f32 %v504, %v937
    %v1058 = vmul.f32 %v505, %v937
    %v1059 = vmul.f32 %v506, %v937
    %v1060 = vmul.f32 %v507, %v938
    %v1061 = vmul.f32 %v508, %v938
    %v1062 = vmul.f32 %v509, %v938
    %v1063 = vmul.f32 %v510, %v938
    %v1064 = vmul.f32 %v511, %v938
    %v1065 = vmul.f32 %v512, %v938
    %v1066 = vmul.f32 %v513, %v939
    %v1067 = vmul.f32 %v514, %v939
    %v1068 = vmul.f32 %v515, %v939
    %v1069 = vmul.f32 %v516, %v939
    %v1070 = vmul.f32 %v517, %v939
    %v1071 = vmul.f32 %v518, %v939
    %v1072 = vmul.f32 %v519, %v940
    %v1073 = vmul.f32 %v520, %v940
    %v1074 = vmul.f32 %v521, %v940
    %v1075 = vmul.f32 %v522, %v940
    %v1076 = vmul.f32 %v523, %v940
    %v1077 = vmul.f32 %v524, %v940
    %v1078 = vmul.f32 %v525, %v941
    %v1079 = vmul.f32 %v526, %v941
    %v1080 = vmul.f32 %v527, %v941
    %v1081 = vmul.f32 %v528, %v941
    %v1082 = vmul.f32 %v529, %v941
    %v1083 = vmul.f32 %v530, %v941
    %v1084 = vmul.f32 %v531, %v942
    %v1085 = vmul.f32 %v532, %v942
    %v1086 = vmul.f32 %v533, %v942
    %v1087 = vmul.f32 %v534, %v942
    %v1088 = vmul.f32 %v535, %v942
    %v1089 = vmul.f32 %v536, %v942
    %v1090 = vmul.f32 %v537, %v943
    %v1091 = vmul.f32 %v538, %v943
    %v1092 = vmul.f32 %v539, %v943
    %v1093 = vmul.f32 %v540, %v943
    %v1094 = vmul.f32 %v541, %v943
    %v1095 = vmul.f32 %v542, %v943
    %v1097 = vlaneseq
    %v1098 = vshrl.u32 %v1097, 7
    %v1099 = vsub.s32 0, %v1098
    %v1100 = vrot.slane %v944, %v1099
    %v1101 = vlaneseq
    %v1102 = vshrl.u32 %v1101, 7
    %v1103 = vsub.s32 1, %v1102
    %v1104 = vrot.slane %v944, %v1103
    %v1105 = vlaneseq
    %v1106 = vshrl.u32 %v1105, 7
    %v1107 = vsub.s32 2, %v1106
    %v1108 = vrot.slane %v944, %v1107
    %v1109 = vlaneseq
    %v1110 = vshrl.u32 %v1109, 7
    %v1111 = vsub.s32 3, %v1110
    %v1112 = vrot.slane %v944, %v1111
    %v1113 = vlaneseq
    %v1114 = vshrl.u32 %v1113, 7
    %v1115 = vsub.s32 4, %v1114
    %v1116 = vrot.slane %v944, %v1115
    %v1117 = vlaneseq
    %v1118 = vshrl.u32 %v1117, 7
    %v1119 = vsub.s32 5, %v1118
    %v1120 = vrot.slane %v944, %v1119
    %v1127 = vmul.f32 %v946, %v1100
    %v1128 = vmul.f32 %v947, %v1104
    %v1129 = vmul.f32 %v948, %v1108
    %v1130 = vmul.f32 %v949, %v1112
    %v1131 = vmul.f32 %v950, %v1116
    %v1132 = vmul.f32 %v951, %v1120
    %v1133 = vmul.f32 %v952, %v1100
    %v1134 = vmul.f32 %v953, %v1104
    %v1135 = vmul.f32 %v954, %v1108
    %v1136 = vmul.f32 %v955, %v1112
    %v1137 = vmul.f32 %v956, %v1116
    %v1138 = vmul.f32 %v957, %v1120
    %v1139 = vmul.f32 %v958, %v1100
    %v1140 = vmul.f32 %v959, %v1104
    %v1141 = vmul.f32 %v960, %v1108
    %v1142 = vmul.f32 %v961, %v1112
    %v1143 = vmul.f32 %v962, %v1116
    %v1144 = vmul.f32 %v963, %v1120
    %v1145 = vmul.f32 %v964, %v1100
    %v1146 = vmul.f32 %v965, %v1104
    %v1147 = vmul.f32 %v966, %v1108
    %v1148 = vmul.f32 %v967, %v1112
    %v1149 = vmul.f32 %v968, %v1116
    %v1150 = vmul.f32 %v969, %v1120
    %v1151 = vmul.f32 %v970, %v1100
    %v1152 = vmul.f32 %v971, %v1104
    %v1153 = vmul.f32 %v972, %v1108
    %v1154 = vmul.f32 %v973, %v1112
    %v1155 = vmul.f32 %v974, %v1116
    %v1156 = vmul.f32 %v975, %v1120
    %v1157 = vmul.f32 %v976, %v1100
    %v1158 = vmul.f32 %v977, %v1104
    %v1159 = vmul.f32 %v978, %v1108
    %v1160 = vmul.f32 %v979, %v1112
    %v1161 = vmul.f32 %v980, %v1116
    %v1162 = vmul.f32 %v981, %v1120
    %v1163 = vmul.f32 %v982, %v1100
    %v1164 = vmul.f32 %v983, %v1104
    %v1165 = vmul.f32 %v984, %v1108
    %v1166 = vmul.f32 %v985, %v1112
    %v1167 = vmul.f32 %v986, %v1116
    %v1168 = vmul.f32 %v987, %v1120
    %v1169 = vmul.f32 %v988, %v1100
    %v1170 = vmul.f32 %v989, %v1104
    %v1171 = vmul.f32 %v990, %v1108
    %v1172 = vmul.f32 %v991, %v1112
    %v1173 = vmul.f32 %v992, %v1116
    %v1174 = vmul.f32 %v993, %v1120
    %v1175 = vmul.f32 %v994, %v1100
    %v1176 = vmul.f32 %v995, %v1104
    %v1177 = vmul.f32 %v996, %v1108
    %v1178 = vmul.f32 %v997, %v1112
    %v1179 = vmul.f32 %v998, %v1116
    %v1180 = vmul.f32 %v999, %v1120
    %v1181 = vmul.f32 %v1000, %v1100
    %v1182 = vmul.f32 %v1001, %v1104
    %v1183 = vmul.f32 %v1002, %v1108
    %v1184 = vmul.f32 %v1003, %v1112
    %v1185 = vmul.f32 %v1004, %v1116
    %v1186 = vmul.f32 %v1005, %v1120
    %v1187 = vmul.f32 %v1006, %v1100
    %v1188 = vmul.f32 %v1007, %v1104
    %v1189 = vmul.f32 %v1008, %v1108
    %v1190 = vmul.f32 %v1009, %v1112
    %v1191 = vmul.f32 %v1010, %v1116
    %v1192 = vmul.f32 %v1011, %v1120
    %v1193 = vmul.f32 %v1012, %v1100
    %v1194 = vmul.f32 %v1013, %v1104
    %v1195 = vmul.f32 %v1014, %v1108
    %v1196 = vmul.f32 %v1015, %v1112
    %v1197 = vmul.f32 %v1016, %v1116
    %v1198 = vmul.f32 %v1017, %v1120
    %v1199 = vmul.f32 %v1018, %v1100
    %v1200 = vmul.f32 %v1019, %v1104
    %v1201 = vmul.f32 %v1020, %v1108
    %v1202 = vmul.f32 %v1021, %v1112
    %v1203 = vmul.f32 %v1022, %v1116
    %v1204 = vmul.f32 %v1023, %v1120
    %v1205 = vmul.f32 %v1024, %v1100
    %v1206 = vmul.f32 %v1025, %v1104
    %v1207 = vmul.f32 %v1026, %v1108
    %v1208 = vmul.f32 %v1027, %v1112
    %v1209 = vmul.f32 %v1028, %v1116
    %v1210 = vmul.f32 %v1029, %v1120
    %v1211 = vmul.f32 %v1030, %v1100
    %v1212 = vmul.f32 %v1031, %v1104
    %v1213 = vmul.f32 %v1032, %v1108
    %v1214 = vmul.f32 %v1033, %v1112
    %v1215 = vmul.f32 %v1034, %v1116
    %v1216 = vmul.f32 %v1035, %v1120
    %v1217 = vmul.f32 %v1036, %v1100
    %v1218 = vmul.f32 %v1037, %v1104
    %v1219 = vmul.f32 %v1038, %v1108
    %v1220 = vmul.f32 %v1039, %v1112
    %v1221 = vmul.f32 %v1040, %v1116
    %v1222 = vmul.f32 %v1041, %v1120
    %v1223 = vmul.f32 %v1042, %v1100
    %v1224 = vmul.f32 %v1043, %v1104
    %v1225 = vmul.f32 %v1044, %v1108
    %v1226 = vmul.f32 %v1045, %v1112
    %v1227 = vmul.f32 %v1046, %v1116
    %v1228 = vmul.f32 %v1047, %v1120
    %v1229 = vmul.f32 %v1048, %v1100
    %v1230 = vmul.f32 %v1049, %v1104
    %v1231 = vmul.f32 %v1050, %v1108
    %v1232 = vmul.f32 %v1051, %v1112
    %v1233 = vmul.f32 %v1052, %v1116
    %v1234 = vmul.f32 %v1053, %v1120
    %v1235 = vmul.f32 %v1054, %v1100
    %v1236 = vmul.f32 %v1055, %v1104
    %v1237 = vmul.f32 %v1056, %v1108
    %v1238 = vmul.f32 %v1057, %v1112
    %v1239 = vmul.f32 %v1058, %v1116
    %v1240 = vmul.f32 %v1059, %v1120
    %v1241 = vmul.f32 %v1060, %v1100
    %v1242 = vmul.f32 %v1061, %v1104
    %v1243 = vmul.f32 %v1062, %v1108
    %v1244 = vmul.f32 %v1063, %v1112
    %v1245 = vmul.f32 %v1064, %v1116
    %v1246 = vmul.f32 %v1065, %v1120
    %v1247 = vmul.f32 %v1066, %v1100
    %v1248 = vmul.f32 %v1067, %v1104
    %v1249 = vmul.f32 %v1068, %v1108
    %v1250 = vmul.f32 %v1069, %v1112
    %v1251 = vmul.f32 %v1070, %v1116
    %v1252 = vmul.f32 %v1071, %v1120
    %v1253 = vmul.f32 %v1072, %v1100
    %v1254 = vmul.f32 %v1073, %v1104
    %v1255 = vmul.f32 %v1074, %v1108
    %v1256 = vmul.f32 %v1075, %v1112
    %v1257 = vmul.f32 %v1076, %v1116
    %v1258 = vmul.f32 %v1077, %v1120
    %v1259 = vmul.f32 %v1078, %v1100
    %v1260 = vmul.f32 %v1079, %v1104
    %v1261 = vmul.f32 %v1080, %v1108
    %v1262 = vmul.f32 %v1081, %v1112
    %v1263 = vmul.f32 %v1082, %v1116
    %v1264 = vmul.f32 %v1083, %v1120
    %v1265 = vmul.f32 %v1084, %v1100
    %v1266 = vmul.f32 %v1085, %v1104
    %v1267 = vmul.f32 %v1086, %v1108
    %v1268 = vmul.f32 %v1087, %v1112
    %v1269 = vmul.f32 %v1088, %v1116
    %v1270 = vmul.f32 %v1089, %v1120
    %v1271 = vmul.f32 %v1090, %v1100
    %v1272 = vmul.f32 %v1091, %v1104
    %v1273 = vmul.f32 %v1092, %v1108
    %v1274 = vmul.f32 %v1093, %v1112
    %v1275 = vmul.f32 %v1094, %v1116
    %v1276 = vmul.f32 %v1095, %v1120
    %v1278 = vlaneseq
    %v1279 = vshrl.u32 %v1278, 7
    %v1280 = vsub.s32 0, %v1279
    %v1281 = vrot.slane %v945, %v1280
    %v1282 = vlaneseq
    %v1283 = vshrl.u32 %v1282, 7
    %v1284 = vsub.s32 1, %v1283
    %v1285 = vrot.slane %v945, %v1284
    %v1286 = vlaneseq
    %v1287 = vshrl.u32 %v1286, 7
    %v1288 = vsub.s32 2, %v1287
    %v1289 = vrot.slane %v945, %v1288
    %v1290 = vlaneseq
    %v1291 = vshrl.u32 %v1290, 7
    %v1292 = vsub.s32 3, %v1291
    %v1293 = vrot.slane %v945, %v1292
    %v1294 = vlaneseq
    %v1295 = vshrl.u32 %v1294, 7
    %v1296 = vsub.s32 4, %v1295
    %v1297 = vrot.slane %v945, %v1296
    %v1298 = vlaneseq
    %v1299 = vshrl.u32 %v1298, 7
    %v1300 = vsub.s32 5, %v1299
    %v1301 = vrot.slane %v945, %v1300
    %v1308 = vadd.f32 %v1127, %v1281
    %v1309 = vadd.f32 %v1128, %v1285
    %v1310 = vadd.f32 %v1129, %v1289
    %v1311 = vadd.f32 %v1130, %v1293
    %v1312 = vadd.f32 %v1131, %v1297
    %v1313 = vadd.f32 %v1132, %v1301
    %v1314 = vadd.f32 %v1133, %v1281
    %v1315 = vadd.f32 %v1134, %v1285
    %v1316 = vadd.f32 %v1135, %v1289
    %v1317 = vadd.f32 %v1136, %v1293
    %v1318 = vadd.f32 %v1137, %v1297
    %v1319 = vadd.f32 %v1138, %v1301
    %v1320 = vadd.f32 %v1139, %v1281
    %v1321 = vadd.f32 %v1140, %v1285
    %v1322 = vadd.f32 %v1141, %v1289
    %v1323 = vadd.f32 %v1142, %v1293
    %v1324 = vadd.f32 %v1143, %v1297
    %v1325 = vadd.f32 %v1144, %v1301
    %v1326 = vadd.f32 %v1145, %v1281
    %v1327 = vadd.f32 %v1146, %v1285
    %v1328 = vadd.f32 %v1147, %v1289
    %v1329 = vadd.f32 %v1148, %v1293
    %v1330 = vadd.f32 %v1149, %v1297
    %v1331 = vadd.f32 %v1150, %v1301
    %v1332 = vadd.f32 %v1151, %v1281
    %v1333 = vadd.f32 %v1152, %v1285
    %v1334 = vadd.f32 %v1153, %v1289
    %v1335 = vadd.f32 %v1154, %v1293
    %v1336 = vadd.f32 %v1155, %v1297
    %v1337 = vadd.f32 %v1156, %v1301
    %v1338 = vadd.f32 %v1157, %v1281
    %v1339 = vadd.f32 %v1158, %v1285
    %v1340 = vadd.f32 %v1159, %v1289
    %v1341 = vadd.f32 %v1160, %v1293
    %v1342 = vadd.f32 %v1161, %v1297
    %v1343 = vadd.f32 %v1162, %v1301
    %v1344 = vadd.f32 %v1163, %v1281
    %v1345 = vadd.f32 %v1164, %v1285
    %v1346 = vadd.f32 %v1165, %v1289
    %v1347 = vadd.f32 %v1166, %v1293
    %v1348 = vadd.f32 %v1167, %v1297
    %v1349 = vadd.f32 %v1168, %v1301
    %v1350 = vadd.f32 %v1169, %v1281
    %v1351 = vadd.f32 %v1170, %v1285
    %v1352 = vadd.f32 %v1171, %v1289
    %v1353 = vadd.f32 %v1172, %v1293
    %v1354 = vadd.f32 %v1173, %v1297
    %v1355 = vadd.f32 %v1174, %v1301
    %v1356 = vadd.f32 %v1175, %v1281
    %v1357 = vadd.f32 %v1176, %v1285
    %v1358 = vadd.f32 %v1177, %v1289
    %v1359 = vadd.f32 %v1178, %v1293
    %v1360 = vadd.f32 %v1179, %v1297
    %v1361 = vadd.f32 %v1180, %v1301
    %v1362 = vadd.f32 %v1181, %v1281
    %v1363 = vadd.f32 %v1182, %v1285
    %v1364 = vadd.f32 %v1183, %v1289
    %v1365 = vadd.f32 %v1184, %v1293
    %v1366 = vadd.f32 %v1185, %v1297
    %v1367 = vadd.f32 %v1186, %v1301
    %v1368 = vadd.f32 %v1187, %v1281
    %v1369 = vadd.f32 %v1188, %v1285
    %v1370 = vadd.f32 %v1189, %v1289
    %v1371 = vadd.f32 %v1190, %v1293
    %v1372 = vadd.f32 %v1191, %v1297
    %v1373 = vadd.f32 %v1192, %v1301
    %v1374 = vadd.f32 %v1193, %v1281
    %v1375 = vadd.f32 %v1194, %v1285
    %v1376 = vadd.f32 %v1195, %v1289
    %v1377 = vadd.f32 %v1196, %v1293
    %v1378 = vadd.f32 %v1197, %v1297
    %v1379 = vadd.f32 %v1198, %v1301
    %v1380 = vadd.f32 %v1199, %v1281
    %v1381 = vadd.f32 %v1200, %v1285
    %v1382 = vadd.f32 %v1201, %v1289
    %v1383 = vadd.f32 %v1202, %v1293
    %v1384 = vadd.f32 %v1203, %v1297
    %v1385 = vadd.f32 %v1204, %v1301
    %v1386 = vadd.f32 %v1205, %v1281
    %v1387 = vadd.f32 %v1206, %v1285
    %v1388 = vadd.f32 %v1207, %v1289
    %v1389 = vadd.f32 %v1208, %v1293
    %v1390 = vadd.f32 %v1209, %v1297
    %v1391 = vadd.f32 %v1210, %v1301
    %v1392 = vadd.f32 %v1211, %v1281
    %v1393 = vadd.f32 %v1212, %v1285
    %v1394 = vadd.f32 %v1213, %v1289
    %v1395 = vadd.f32 %v1214, %v1293
    %v1396 = vadd.f32 %v1215, %v1297
    %v1397 = vadd.f32 %v1216, %v1301
    %v1398 = vadd.f32 %v1217, %v1281
    %v1399 = vadd.f32 %v1218, %v1285
    %v1400 = vadd.f32 %v1219, %v1289
    %v1401 = vadd.f32 %v1220, %v1293
    %v1402 = vadd.f32 %v1221, %v1297
    %v1403 = vadd.f32 %v1222, %v1301
    %v1404 = vadd.f32 %v1223, %v1281
    %v1405 = vadd.f32 %v1224, %v1285
    %v1406 = vadd.f32 %v1225, %v1289
    %v1407 = vadd.f32 %v1226, %v1293
    %v1408 = vadd.f32 %v1227, %v1297
    %v1409 = vadd.f32 %v1228, %v1301
    %v1410 = vadd.f32 %v1229, %v1281
    %v1411 = vadd.f32 %v1230, %v1285
    %v1412 = vadd.f32 %v1231, %v1289
    %v1413 = vadd.f32 %v1232, %v1293
    %v1414 = vadd.f32 %v1233, %v1297
    %v1415 = vadd.f32 %v1234, %v1301
    %v1416 = vadd.f32 %v1235, %v1281
    %v1417 = vadd.f32 %v1236, %v1285
    %v1418 = vadd.f32 %v1237, %v1289
    %v1419 = vadd.f32 %v1238, %v1293
    %v1420 = vadd.f32 %v1239, %v1297
    %v1421 = vadd.f32 %v1240, %v1301
    %v1422 = vadd.f32 %v1241, %v1281
    %v1423 = vadd.f32 %v1242, %v1285
    %v1424 = vadd.f32 %v1243, %v1289
    %v1425 = vadd.f32 %v1244, %v1293
    %v1426 = vadd.f32 %v1245, %v1297
    %v1427 = vadd.f32 %v1246, %v1301
    %v1428 = vadd.f32 %v1247, %v1281
    %v1429 = vadd.f32 %v1248, %v1285
    %v1430 = vadd.f32 %v1249, %v1289
    %v1431 = vadd.f32 %v1250, %v1293
    %v1432 = vadd.f32 %v1251, %v1297
    %v1433 = vadd.f32 %v1252, %v1301
    %v1434 = vadd.f32 %v1253, %v1281
    %v1435 = vadd.f32 %v1254, %v1285
    %v1436 = vadd.f32 %v1255, %v1289
    %v1437 = vadd.f32 %v1256, %v1293
    %v1438 = vadd.f32 %v1257, %v1297
    %v1439 = vadd.f32 %v1258, %v1301
    %v1440 = vadd.f32 %v1259, %v1281
    %v1441 = vadd.f32 %v1260, %v1285
    %v1442 = vadd.f32 %v1261, %v1289
    %v1443 = vadd.f32 %v1262, %v1293
    %v1444 = vadd.f32 %v1263, %v1297
    %v1445 = vadd.f32 %v1264, %v1301
    %v1446 = vadd.f32 %v1265, %v1281
    %v1447 = vadd.f32 %v1266, %v1285
    %v1448 = vadd.f32 %v1267, %v1289
    %v1449 = vadd.f32 %v1268, %v1293
    %v1450 = vadd.f32 %v1269, %v1297
    %v1451 = vadd.f32 %v1270, %v1301
    %v1452 = vadd.f32 %v1271, %v1281
    %v1453 = vadd.f32 %v1272, %v1285
    %v1454 = vadd.f32 %v1273, %v1289
    %v1455 = vadd.f32 %v1274, %v1293
    %v1456 = vadd.f32 %v1275, %v1297
    %v1457 = vadd.f32 %v1276, %v1301
    %1458 = vst [vmem:[#allocation7] sm:$0xff] %v1308
    %1459 = vst [vmem:[#allocation7 + $0x8] sm:$0xff] %v1309
    %1460 = vst [vmem:[#allocation7 + $0x10] sm:$0xff] %v1310
    %1461 = vst [vmem:[#allocation7 + $0x18] sm:$0xff] %v1311
    %1462 = vst [vmem:[#allocation7 + $0x20] sm:$0xff] %v1312
    %1463 = vst [vmem:[#allocation7 + $0x28] sm:$0xff] %v1313
    %1464 = vst [vmem:[#allocation7 + $0x30] sm:$0xff] %v1314
    %1465 = vst [vmem:[#allocation7 + $0x38] sm:$0xff] %v1315
    %1466 = vst [vmem:[#allocation7 + $0x40] sm:$0xff] %v1316
    %1467 = vst [vmem:[#allocation7 + $0x48] sm:$0xff] %v1317
    %1468 = vst [vmem:[#allocation7 + $0x50] sm:$0xff] %v1318
    %1469 = vst [vmem:[#allocation7 + $0x58] sm:$0xff] %v1319
    %1470 = vst [vmem:[#allocation7 + $0x60] sm:$0xff] %v1320
    %1471 = vst [vmem:[#allocation7 + $0x68] sm:$0xff] %v1321
    %1472 = vst [vmem:[#allocation7 + $0x70] sm:$0xff] %v1322
    %1473 = vst [vmem:[#allocation7 + $0x78] sm:$0xff] %v1323
    %1474 = vst [vmem:[#allocation7 + $0x80] sm:$0xff] %v1324
    %1475 = vst [vmem:[#allocation7 + $0x88] sm:$0xff] %v1325
    %1476 = vst [vmem:[#allocation7 + $0x90] sm:$0xff] %v1326
    %1477 = vst [vmem:[#allocation7 + $0x98] sm:$0xff] %v1327
    %1478 = vst [vmem:[#allocation7 + $0xa0] sm:$0xff] %v1328
    %1479 = vst [vmem:[#allocation7 + $0xa8] sm:$0xff] %v1329
    %1480 = vst [vmem:[#allocation7 + $0xb0] sm:$0xff] %v1330
    %1481 = vst [vmem:[#allocation7 + $0xb8] sm:$0xff] %v1331
    %1482 = vst [vmem:[#allocation7 + $0xc0] sm:$0xff] %v1332
    %1483 = vst [vmem:[#allocation7 + $0xc8] sm:$0xff] %v1333
    %1484 = vst [vmem:[#allocation7 + $0xd0] sm:$0xff] %v1334
    %1485 = vst [vmem:[#allocation7 + $0xd8] sm:$0xff] %v1335
    %1486 = vst [vmem:[#allocation7 + $0xe0] sm:$0xff] %v1336
    %1487 = vst [vmem:[#allocation7 + $0xe8] sm:$0xff] %v1337
    %1488 = vst [vmem:[#allocation7 + $0xf0] sm:$0xff] %v1338
    %1489 = vst [vmem:[#allocation7 + $0xf8] sm:$0xff] %v1339
    %1490 = vst [vmem:[#allocation7 + $0x100] sm:$0xff] %v1340
    %1491 = vst [vmem:[#allocation7 + $0x108] sm:$0xff] %v1341
    %1492 = vst [vmem:[#allocation7 + $0x110] sm:$0xff] %v1342
    %1493 = vst [vmem:[#allocation7 + $0x118] sm:$0xff] %v1343
    %1494 = vst [vmem:[#allocation7 + $0x120] sm:$0xff] %v1344
    %1495 = vst [vmem:[#allocation7 + $0x128] sm:$0xff] %v1345
    %1496 = vst [vmem:[#allocation7 + $0x130] sm:$0xff] %v1346
    %1497 = vst [vmem:[#allocation7 + $0x138] sm:$0xff] %v1347
    %1498 = vst [vmem:[#allocation7 + $0x140] sm:$0xff] %v1348
    %1499 = vst [vmem:[#allocation7 + $0x148] sm:$0xff] %v1349
    %1500 = vst [vmem:[#allocation7 + $0x150] sm:$0xff] %v1350
    %1501 = vst [vmem:[#allocation7 + $0x158] sm:$0xff] %v1351
    %1502 = vst [vmem:[#allocation7 + $0x160] sm:$0xff] %v1352
    %1503 = vst [vmem:[#allocation7 + $0x168] sm:$0xff] %v1353
    %1504 = vst [vmem:[#allocation7 + $0x170] sm:$0xff] %v1354
    %1505 = vst [vmem:[#allocation7 + $0x178] sm:$0xff] %v1355
    %1506 = vst [vmem:[#allocation7 + $0x180] sm:$0xff] %v1356
    %1507 = vst [vmem:[#allocation7 + $0x188] sm:$0xff] %v1357
    %1508 = vst [vmem:[#allocation7 + $0x190] sm:$0xff] %v1358
    %1509 = vst [vmem:[#allocation7 + $0x198] sm:$0xff] %v1359
    %1510 = vst [vmem:[#allocation7 + $0x1a0] sm:$0xff] %v1360
    %1511 = vst [vmem:[#allocation7 + $0x1a8] sm:$0xff] %v1361
    %1512 = vst [vmem:[#allocation7 + $0x1b0] sm:$0xff] %v1362
    %1513 = vst [vmem:[#allocation7 + $0x1b8] sm:$0xff] %v1363
    %1514 = vst [vmem:[#allocation7 + $0x1c0] sm:$0xff] %v1364
    %1515 = vst [vmem:[#allocation7 + $0x1c8] sm:$0xff] %v1365
    %1516 = vst [vmem:[#allocation7 + $0x1d0] sm:$0xff] %v1366
    %1517 = vst [vmem:[#allocation7 + $0x1d8] sm:$0xff] %v1367
    %1518 = vst [vmem:[#allocation7 + $0x1e0] sm:$0xff] %v1368
    %1519 = vst [vmem:[#allocation7 + $0x1e8] sm:$0xff] %v1369
    %1520 = vst [vmem:[#allocation7 + $0x1f0] sm:$0xff] %v1370
    %1521 = vst [vmem:[#allocation7 + $0x1f8] sm:$0xff] %v1371
    %1522 = vst [vmem:[#allocation7 + $0x200] sm:$0xff] %v1372
    %1523 = vst [vmem:[#allocation7 + $0x208] sm:$0xff] %v1373
    %1524 = vst [vmem:[#allocation7 + $0x210] sm:$0xff] %v1374
    %1525 = vst [vmem:[#allocation7 + $0x218] sm:$0xff] %v1375
    %1526 = vst [vmem:[#allocation7 + $0x220] sm:$0xff] %v1376
    %1527 = vst [vmem:[#allocation7 + $0x228] sm:$0xff] %v1377
    %1528 = vst [vmem:[#allocation7 + $0x230] sm:$0xff] %v1378
    %1529 = vst [vmem:[#allocation7 + $0x238] sm:$0xff] %v1379
    %1530 = vst [vmem:[#allocation7 + $0x240] sm:$0xff] %v1380
    %1531 = vst [vmem:[#allocation7 + $0x248] sm:$0xff] %v1381
    %1532 = vst [vmem:[#allocation7 + $0x250] sm:$0xff] %v1382
    %1533 = vst [vmem:[#allocation7 + $0x258] sm:$0xff] %v1383
    %1534 = vst [vmem:[#allocation7 + $0x260] sm:$0xff] %v1384
    %1535 = vst [vmem:[#allocation7 + $0x268] sm:$0xff] %v1385
    %1536 = vst [vmem:[#allocation7 + $0x270] sm:$0xff] %v1386
    %1537 = vst [vmem:[#allocation7 + $0x278] sm:$0xff] %v1387
    %1538 = vst [vmem:[#allocation7 + $0x280] sm:$0xff] %v1388
    %1539 = vst [vmem:[#allocation7 + $0x288] sm:$0xff] %v1389
    %1540 = vst [vmem:[#allocation7 + $0x290] sm:$0xff] %v1390
    %1541 = vst [vmem:[#allocation7 + $0x298] sm:$0xff] %v1391
    %1542 = vst [vmem:[#allocation7 + $0x2a0] sm:$0xff] %v1392
    %1543 = vst [vmem:[#allocation7 + $0x2a8] sm:$0xff] %v1393
    %1544 = vst [vmem:[#allocation7 + $0x2b0] sm:$0xff] %v1394
    %1545 = vst [vmem:[#allocation7 + $0x2b8] sm:$0xff] %v1395
    %1546 = vst [vmem:[#allocation7 + $0x2c0] sm:$0xff] %v1396
    %1547 = vst [vmem:[#allocation7 + $0x2c8] sm:$0xff] %v1397
    %1548 = vst [vmem:[#allocation7 + $0x2d0] sm:$0xff] %v1398
    %1549 = vst [vmem:[#allocation7 + $0x2d8] sm:$0xff] %v1399
    %1550 = vst [vmem:[#allocation7 + $0x2e0] sm:$0xff] %v1400
    %1551 = vst [vmem:[#allocation7 + $0x2e8] sm:$0xff] %v1401
    %1552 = vst [vmem:[#allocation7 + $0x2f0] sm:$0xff] %v1402
    %1553 = vst [vmem:[#allocation7 + $0x2f8] sm:$0xff] %v1403
    %1554 = vst [vmem:[#allocation7 + $0x300] sm:$0xff] %v1404
    %1555 = vst [vmem:[#allocation7 + $0x308] sm:$0xff] %v1405
    %1556 = vst [vmem:[#allocation7 + $0x310] sm:$0xff] %v1406
    %1557 = vst [vmem:[#allocation7 + $0x318] sm:$0xff] %v1407
    %1558 = vst [vmem:[#allocation7 + $0x320] sm:$0xff] %v1408
    %1559 = vst [vmem:[#allocation7 + $0x328] sm:$0xff] %v1409
    %1560 = vst [vmem:[#allocation7 + $0x330] sm:$0xff] %v1410
    %1561 = vst [vmem:[#allocation7 + $0x338] sm:$0xff] %v1411
    %1562 = vst [vmem:[#allocation7 + $0x340] sm:$0xff] %v1412
    %1563 = vst [vmem:[#allocation7 + $0x348] sm:$0xff] %v1413
    %1564 = vst [vmem:[#allocation7 + $0x350] sm:$0xff] %v1414
    %1565 = vst [vmem:[#allocation7 + $0x358] sm:$0xff] %v1415
    %1566 = vst [vmem:[#allocation7 + $0x360] sm:$0xff] %v1416
    %1567 = vst [vmem:[#allocation7 + $0x368] sm:$0xff] %v1417
    %1568 = vst [vmem:[#allocation7 + $0x370] sm:$0xff] %v1418
    %1569 = vst [vmem:[#allocation7 + $0x378] sm:$0xff] %v1419
    %1570 = vst [vmem:[#allocation7 + $0x380] sm:$0xff] %v1420
    %1571 = vst [vmem:[#allocation7 + $0x388] sm:$0xff] %v1421
    %1572 = vst [vmem:[#allocation7 + $0x390] sm:$0xff] %v1422
    %1573 = vst [vmem:[#allocation7 + $0x398] sm:$0xff] %v1423
    %1574 = vst [vmem:[#allocation7 + $0x3a0] sm:$0xff] %v1424
    %1575 = vst [vmem:[#allocation7 + $0x3a8] sm:$0xff] %v1425
    %1576 = vst [vmem:[#allocation7 + $0x3b0] sm:$0xff] %v1426
    %1577 = vst [vmem:[#allocation7 + $0x3b8] sm:$0xff] %v1427
    %1578 = vst [vmem:[#allocation7 + $0x3c0] sm:$0xff] %v1428
    %1579 = vst [vmem:[#allocation7 + $0x3c8] sm:$0xff] %v1429
    %1580 = vst [vmem:[#allocation7 + $0x3d0] sm:$0xff] %v1430
    %1581 = vst [vmem:[#allocation7 + $0x3d8] sm:$0xff] %v1431
    %1582 = vst [vmem:[#allocation7 + $0x3e0] sm:$0xff] %v1432
    %1583 = vst [vmem:[#allocation7 + $0x3e8] sm:$0xff] %v1433
    %1584 = vst [vmem:[#allocation7 + $0x3f0] sm:$0xff] %v1434
    %1585 = vst [vmem:[#allocation7 + $0x3f8] sm:$0xff] %v1435
    %1586 = vst [vmem:[#allocation7 + $0x400] sm:$0xff] %v1436
    %1587 = vst [vmem:[#allocation7 + $0x408] sm:$0xff] %v1437
    %1588 = vst [vmem:[#allocation7 + $0x410] sm:$0xff] %v1438
    %1589 = vst [vmem:[#allocation7 + $0x418] sm:$0xff] %v1439
    %1590 = vst [vmem:[#allocation7 + $0x420] sm:$0xff] %v1440
    %1591 = vst [vmem:[#allocation7 + $0x428] sm:$0xff] %v1441
    %1592 = vst [vmem:[#allocation7 + $0x430] sm:$0xff] %v1442
    %1593 = vst [vmem:[#allocation7 + $0x438] sm:$0xff] %v1443
    %1594 = vst [vmem:[#allocation7 + $0x440] sm:$0xff] %v1444
    %1595 = vst [vmem:[#allocation7 + $0x448] sm:$0xff] %v1445
    %1596 = vst [vmem:[#allocation7 + $0x450] sm:$0xff] %v1446
    %1597 = vst [vmem:[#allocation7 + $0x458] sm:$0xff] %v1447
    %1598 = vst [vmem:[#allocation7 + $0x460] sm:$0xff] %v1448
    %1599 = vst [vmem:[#allocation7 + $0x468] sm:$0xff] %v1449
    %1600 = vst [vmem:[#allocation7 + $0x470] sm:$0xff] %v1450
    %1601 = vst [vmem:[#allocation7 + $0x478] sm:$0xff] %v1451
    %1602 = vst [vmem:[#allocation7 + $0x480] sm:$0xf] %v1452
    %1603 = vst [vmem:[#allocation7 + $0x488] sm:$0xf] %v1453
    %1604 = vst [vmem:[#allocation7 + $0x490] sm:$0xf] %v1454
    %1605 = vst [vmem:[#allocation7 + $0x498] sm:$0xf] %v1455
    %1606 = vst [vmem:[#allocation7 + $0x4a0] sm:$0xf] %v1456
    %1607 = vst [vmem:[#allocation7 + $0x4a8] sm:$0xf] %v1457
    // Predicated region
    $region22: #{tpu_custom_call.1} parent=1 // pred_check
      _
    $region23: #{tpu_custom_call.1} parent=1 // pred_check_branch
      %1609 = sbr.rel (0) target = $region25
    $region24: #{tpu_custom_call.1} parent=1 // pred_region
      %s1611 = ssub.s32 19200, 19200
      %1612 = vsyncadd [#allocation4], %s1611
      %s1613 = sshll.u32 [#allocation7], 4
      %s1614 = int_to_ptr.vmem [resolvable:$true] %s1613
      %1619 = dma.vmem_to_hbm [thread:$0]  %s1614, 19200, %s3, [#allocation4], 768, 768, 48
    $region25: #{tpu_custom_call.1} parent=1 // pred_fallthru
      _
    // Predicated region
    $region26: #{tpu_custom_call.1} parent=1 // pred_check
      _
    $region27: #{tpu_custom_call.1} parent=1 // pred_check_branch
      %1621 = sbr.rel (0) target = $region29
    $region28: #{tpu_custom_call.1} parent=1 // pred_region
      %1622 = dma.done [#allocation4], 19200
    $region29: #{tpu_custom_call.1} parent=1 // pred_fallthru
      _
    %1623 = vsyncpa [#allocation3], 1
    %1624 = vsyncpa [#allocation6], 1
    %1625 = vsyncpa [#allocation4], 1

</llo_original>
